<compile_context>
chip_gen: v5e
topology: v5e:2x2
jax: 0.10.0
libtpu: 0.0.40
codegen_flags: <defaults>
</compile_context>

<pallas_src>
import math
from functools import partial

import jax
import jax.numpy as jnp
from jax.experimental import pallas as pl
from jax.experimental.pallas import tpu as pltpu


def _largest_divisor(n, cap, multiple_of=1):
    """Largest divisor of n that is <= cap and a multiple of `multiple_of` (or None)."""
    best = None
    for c in range(1, min(n, cap) + 1):
        if n % c == 0 and c % multiple_of == 0:
            best = c
    return best


def _cross_modal_kernel(
    img_ref, txt_ref, mask_ref,
    wq_ref, bq_ref, wk_ref, bk_ref, wv_ref, bv_ref,
    wo_ref, bo_ref,
    g1_ref, be1_ref,
    w1_ref, bf1_ref, w2_ref, bf2_ref,
    g2_ref, be2_ref,
    wc_ref, bc_ref,
    x_ref, *rest,
    heads, head_dim, bb, tp, n_txt, nc, emit_weights, cls_lane_dense,
):
    if emit_weights:
        wts_ref, cls_ref, k_sc, v_sc = rest
    else:
        cls_ref, k_sc, v_sc = rest
        wts_ref = None

    D = heads * head_dim
    M = bb * tp

    # ---- K/V projections: computed once per batch block (inner p axis == 0),
    #      cached in bf16 VMEM scratch and reused for every P tile of this batch block.
    @pl.when(pl.program_id(1) == 0)
    def _():
        txt = txt_ref[...].reshape(bb * n_txt, D)            # bf16 from the wrapper
        k = jnp.dot(txt, wk_ref[...], preferred_element_type=jnp.float32) + bk_ref[...]
        v = jnp.dot(txt, wv_ref[...], preferred_element_type=jnp.float32) + bv_ref[...]
        k_sc[...] = k.reshape(bb, n_txt, D).astype(jnp.bfloat16)
        v_sc[...] = v.reshape(bb, n_txt, D).astype(jnp.bfloat16)

    # ---- Q projection for this (batch block, P tile) ---------------------------------
    # (per-head temperature already folded into wq/bq by the wrapper, in f32)
    img = img_ref[...].reshape(M, D)                          # f32 (residual needs f32)
    q = jnp.dot(img.astype(jnp.bfloat16), wq_ref[...],
                preferred_element_type=jnp.float32) + bq_ref[...]
    q3 = q.reshape(bb, tp, D)

    # hoisted mask broadcast: one (bb, tp, N) tile, reused by every head
    addm = jnp.broadcast_to(mask_ref[...], (bb, tp, n_txt))

    # ---- attention: static head loop (heads is small); each head's score tile dies
    #      within its iteration; contractions are batched over the bb batch rows.
    ao_parts = []
    for h in range(heads):
        lo = h * head_dim
        qh = q3[:, :, lo:lo + head_dim].astype(jnp.bfloat16)  # (bb, TP, d)
        kh = k_sc[:, :, lo:lo + head_dim]                     # (bb, N,  d) bf16 (cached)
        vh = v_sc[:, :, lo:lo + head_dim]                     # (bb, N,  d) bf16 (cached)

        s = jnp.einsum('bpd,bnd->bpn', qh, kh,
                       preferred_element_type=jnp.float32)    # (bb, TP, N) f32
        s = s + addm
        s = s - jnp.max(s, axis=-1, keepdims=True)
        e = jnp.exp(s)                                        # f32 (v5e EUP has no bf16)
        # approx reciprocal on the EUP: rows sum to 1 only to ~1e-3 (documented)
        w = e * pl.reciprocal(jnp.sum(e, axis=-1, keepdims=True), approx=True)
        if emit_weights:
            wts_ref[:, h] = w.astype(wts_ref.dtype)           # lane-dense (N on lanes)

        ao = jnp.einsum('bpn,bnd->bpd', w.astype(jnp.bfloat16), vh,
                        preferred_element_type=jnp.float32)   # (bb, TP, d)
        ao_parts.append(ao.astype(jnp.bfloat16))

    # one full (M, D) bf16 value fed straight into the out-projection (no scratch,
    # no 64-lane masked stores, no read-back)
    attn = jnp.concatenate(ao_parts, axis=-1).reshape(M, D)
    out = jnp.dot(attn, wo_ref[...], preferred_element_type=jnp.float32) + bo_ref[...]

    # ---- residual + LayerNorm 1 (f32 element-wise; dropout = identity) ----------------
    x = img + out
    mu = jnp.mean(x, axis=-1, keepdims=True)
    var = jnp.mean((x - mu) ** 2, axis=-1, keepdims=True)
    x = (x - mu) * jax.lax.rsqrt(var + 1e-5) * g1_ref[...] + be1_ref[...]

    # ---- feed-forward: Linear -> ReLU -> Linear (bf16 MXU operands) -------------------
    # TODO(synk): tile the hidden dim (reduction loop over hidden chunks) for very large
    # D*hidden on v7x so only (D, tk_h)/(tk_h, D) weight slices are resident.
    h1 = jnp.dot(x.astype(jnp.bfloat16), w1_ref[...],
                 preferred_element_type=jnp.float32) + bf1_ref[...]
    h1 = jnp.maximum(h1, 0.0)
    ff = jnp.dot(h1.astype(jnp.bfloat16), w2_ref[...],
                 preferred_element_type=jnp.float32) + bf2_ref[...]

    # ---- residual + LayerNorm 2 --------------------------------------------------------
    y = x + ff
    mu = jnp.mean(y, axis=-1, keepdims=True)
    var = jnp.mean((y - mu) ** 2, axis=-1, keepdims=True)
    y = (y - mu) * jax.lax.rsqrt(var + 1e-5) * g2_ref[...] + be2_ref[...]
    y3 = y.reshape(bb, tp, D)
    x_ref[...] = y3

    # ---- classifier head + sigmoid ------------------------------------------------------
    if nc == 1 and cls_lane_dense:
        # lane-dense slab: (bb, 2, tp) with the TP query rows on the lane axis
        logit_rows = jnp.sum(y3 * wc_ref[...], axis=-1) + bc_ref[...]     # (bb, tp)
        prob_rows = jax.nn.sigmoid(logit_rows)
        cls_ref[...] = jnp.stack([logit_rows, prob_rows], axis=1)
    else:
        if nc == 1:
            # (M, D) @ (D, 1) would use 1/128 MXU columns; do it on the VPU/XLU instead.
            logits = jnp.sum(y * wc_ref[...], axis=-1, keepdims=True) + bc_ref[...]
        else:
            logits = jnp.dot(y.astype(jnp.bfloat16), wc_ref[...],
                             preferred_element_type=jnp.float32) + bc_ref[...]
        probs = jax.nn.sigmoid(logits)
        cls_ref[...] = jnp.concatenate([logits, probs], axis=-1).reshape(bb, tp, 2 * nc)


def cross_modal_block(img_emb, txt_emb, text_mask, params, *, heads,
                      weights_dtype=jnp.bfloat16, return_attn_weights=True,
                      max_rows_per_step=512, vmem_cap_mb=64):
    """Forward pass of CrossModalBlock.

    weights_dtype: dtype of the returned attention weights (bf16 default halves the
      largest HBM store; pass jnp.float32 to match the torch module's dtype exactly).
    return_attn_weights: False skips emitting the attention-weights output entirely.
    max_rows_per_step / vmem_cap_mb: tiling / VMEM knobs — raise to ~1024 / ~100 on
      v6e (128 MiB VMEM), lower to ~256 / ~48 on v7x (64 MiB VMEM).
    """
    img_emb = img_emb.astype(jnp.float32)              # residual path needs f32
    txt_bf = txt_emb.astype(jnp.bfloat16)              # only ever an MXU operand

    B, P, D = img_emb.shape
    _, N, _ = txt_emb.shape
    d = D // heads
    hidden = params["ffn_w1"].shape[0]
    nc = params["classifier_w"].shape[0]

    # ---- parameter glue: fold per-head temperature (f32), pre-transpose, cast bf16 ----
    scale = 1.0 / (math.sqrt(d) * jnp.exp(params["log_tau"].astype(jnp.float32)))
    col = jnp.repeat(scale, d)                                                # (D,)
    wq_t = (params["in_proj_w"][:D].T * col[None, :]).astype(jnp.bfloat16)
    bq = (params["in_proj_b"][:D] * col).reshape(1, D).astype(jnp.float32)
    wk_t = params["in_proj_w"][D:2 * D].T.astype(jnp.bfloat16)
    bk = params["in_proj_b"][D:2 * D].reshape(1, D).astype(jnp.float32)
    wv_t = params["in_proj_w"][2 * D:].T.astype(jnp.bfloat16)
    bv = params["in_proj_b"][2 * D:].reshape(1, D).astype(jnp.float32)
    wo_t = params["out_proj_w"].T.astype(jnp.bfloat16)
    bo = params["out_proj_b"].reshape(1, D).astype(jnp.float32)
    g1 = params["ln1_g"].reshape(1, D).astype(jnp.float32)
    be1 = params["ln1_b"].reshape(1, D).astype(jnp.float32)
    w1_t = params["ffn_w1"].T.astype(jnp.bfloat16)
    bf1 = params["ffn_b1"].reshape(1, hidden).astype(jnp.float32)
    w2_t = params["ffn_w2"].T.astype(jnp.bfloat16)
    bf2 = params["ffn_b2"].reshape(1, D).astype(jnp.float32)
    g2 = params["ln2_g"].reshape(1, D).astype(jnp.float32)
    be2 = params["ln2_b"].reshape(1, D).astype(jnp.float32)
    if nc == 1:
        wc = params["classifier_w"].reshape(1, D).astype(jnp.float32)   # VPU path
    else:
        wc = params["classifier_w"].T.astype(jnp.bfloat16)              # (D, nc) MXU path
    bc = params["classifier_b"].reshape(1, nc).astype(jnp.float32)

    if text_mask is None:
        text_mask = jnp.ones((B, N), dtype=bool)
    addm = jnp.where(text_mask, 0.0, -1e30).astype(jnp.float32).reshape(B, 1, N)

    # ---- tiling: BB batch rows x TP query rows per grid step ---------------------------
    # p is the INNER "arbitrary" axis (K/V cached across it); b is the "parallel" axis.
    tp = _largest_divisor(P, min(max_rows_per_step, 256), multiple_of=8) or P
    bb_cap = max(1, max_rows_per_step // max(tp, 1))
    if B >= 2:
        bb_cap = min(bb_cap, B // 2)      # keep >=2 steps on the parallel batch axis
    bb = _largest_divisor(B, bb_cap) or 1
    grid = (B // bb, P // tp)

    # lane-dense classifier slab requires tp to be a legal lane-axis block dim
    cls_lane_dense = (nc == 1) and (tp % 128 == 0 or tp == P)

    def const_spec(shape):
        return pl.BlockSpec(shape, lambda b, p: (0,) * len(shape))

    in_specs = [
        pl.BlockSpec((bb, tp, D), lambda b, p: (b, p, 0)),        # img block (f32)
        pl.BlockSpec((bb, N, D), lambda b, p: (b, 0, 0)),         # txt block (bf16)
        pl.BlockSpec((bb, 1, N), lambda b, p: (b, 0, 0)),         # additive mask
        const_spec((D, D)), const_spec((1, D)),                   # wq, bq
        const_spec((D, D)), const_spec((1, D)),                   # wk, bk
        const_spec((D, D)), const_spec((1, D)),                   # wv, bv
        const_spec((D, D)), const_spec((1, D)),                   # wo, bo
        const_spec((1, D)), const_spec((1, D)),                   # ln1 gamma/beta
        const_spec((D, hidden)), const_spec((1, hidden)),         # ffn1
        const_spec((hidden, D)), const_spec((1, D)),              # ffn2
        const_spec((1, D)), const_spec((1, D)),                   # ln2 gamma/beta
        const_spec(wc.shape), const_spec((1, nc)),                # classifier
    ]

    out_specs = [pl.BlockSpec((bb, tp, D), lambda b, p: (b, p, 0))]           # x
    out_shapes = [jax.ShapeDtypeStruct((B, P, D), jnp.float32)]
    if return_attn_weights:
        out_specs.append(pl.BlockSpec((bb, heads, tp, N), lambda b, p: (b, 0, p, 0)))
        out_shapes.append(jax.ShapeDtypeStruct((B, heads, P, N), weights_dtype))
    if cls_lane_dense:
        out_specs.append(pl.BlockSpec((bb, 2, tp), lambda b, p: (b, 0, p)))
        out_shapes.append(jax.ShapeDtypeStruct((B, 2, P), jnp.float32))
    else:
        out_specs.append(pl.BlockSpec((bb, tp, 2 * nc), lambda b, p: (b, p, 0)))
        out_shapes.append(jax.ShapeDtypeStruct((B, P, 2 * nc), jnp.float32))

    scratch_shapes = [pltpu.VMEM((bb, N, D), jnp.bfloat16),   # cached K
                      pltpu.VMEM((bb, N, D), jnp.bfloat16)]   # cached V

    # ---- VMEM budget: double-buffered inputs/outputs + 2x constant weights + scratch
    #      + transient activations (q/k/v, score tile, FFN intermediate) -----------------
    M = bb * tp
    wts_isz = jnp.dtype(weights_dtype).itemsize
    mat_bf16 = 4 * D * D + 2 * D * hidden + (D * nc if nc > 1 else 0)
    vec_f32 = 9 * D + hidden + nc + (D if nc == 1 else 0)
    wgt_bytes = 2 * (2 * mat_bf16 + 4 * vec_f32)
    in_bytes = 2 * (bb * tp * D * 4 + bb * N * D * 2 + bb * N * 4)
    out_bytes = 2 * (bb * tp * D * 4 + bb * tp * 2 * nc * 4
                     + (bb * heads * tp * N * wts_isz if return_attn_weights else 0))
    scr_bytes = 2 * bb * N * D * 2
    act_bytes = 4 * (3 * M * D + M * hidden + 3 * bb * tp * N) + 2 * M * D
    total = wgt_bytes + in_bytes + out_bytes + scr_bytes + act_bytes
    vmem_limit = int(min(vmem_cap_mb * 2 ** 20, max(32 * 2 ** 20, int(1.25 * total))))

    outs = pl.pallas_call(
        partial(_cross_modal_kernel, heads=heads, head_dim=d, bb=bb, tp=tp,
                n_txt=N, nc=nc, emit_weights=return_attn_weights,
                cls_lane_dense=cls_lane_dense),
        grid_spec=pltpu.PrefetchScalarGridSpec(
            num_scalar_prefetch=0,
            grid=grid,
            in_specs=in_specs,
            out_specs=out_specs,
            scratch_shapes=scratch_shapes,
        ),
        out_shape=tuple(out_shapes),
        compiler_params=pltpu.CompilerParams(
            dimension_semantics=("parallel", "arbitrary"),
            vmem_limit_bytes=vmem_limit),
    )(img_emb, txt_bf, addm,
      wq_t, bq, wk_t, bk, wv_t, bv, wo_t, bo,
      g1, be1, w1_t, bf1, w2_t, bf2, g2, be2, wc, bc)

    if return_attn_weights:
        x, wts, cls = outs
    else:
        x, cls = outs
        wts = None

    if cls_lane_dense:
        logits = cls[:, 0, :]      # (B, P) — already the squeezed shape for nc == 1
        probs = cls[:, 1, :]
    else:
        logits = cls[..., :nc]
        probs = cls[..., nc:]
        if nc == 1:
            logits = logits.squeeze(-1)   # matches .squeeze(-1) in the torch module
            probs = probs.squeeze(-1)
    return x, wts, logits, probs


# ---------------- pure-JAX f32 reference (for correctness check) ----------------
def _reference(img_emb, txt_emb, text_mask, params, heads):
    B, P, D = img_emb.shape
    _, N, _ = txt_emb.shape
    d = D // heads

    def ln(x, g, b):
        mu = jnp.mean(x, axis=-1, keepdims=True)
        var = jnp.mean((x - mu) ** 2, axis=-1, keepdims=True)
        return (x - mu) * jax.lax.rsqrt(var + 1e-5) * g + b

    Wq, bq = params["in_proj_w"][:D], params["in_proj_b"][:D]
    Wk, bk = params["in_proj_w"][D:2 * D], params["in_proj_b"][D:2 * D]
    Wv, bv = params["in_proj_w"][2 * D:], params["in_proj_b"][2 * D:]
    q = img_emb @ Wq.T + bq
    k = txt_emb @ Wk.T + bk
    v = txt_emb @ Wv.T + bv
    Q = q.reshape(B, P, heads, d).transpose(0, 2, 1, 3)
    K = k.reshape(B, N, heads, d).transpose(0, 2, 1, 3)
    V = v.reshape(B, N, heads, d).transpose(0, 2, 1, 3)
    scores = jnp.einsum("bhpd,bhqd->bhpq", Q, K) / math.sqrt(d)
    scores = scores / jnp.exp(params["log_tau"]).reshape(1, heads, 1, 1)
    scores = jnp.where(text_mask[:, None, None, :], scores, -1e30)
    weights = jax.nn.softmax(scores, axis=-1)
    attn = jnp.einsum("bhpq,bhqd->bhpd", weights, V)
    attn = attn.transpose(0, 2, 1, 3).reshape(B, P, D)
    out = attn @ params["out_proj_w"].T + params["out_proj_b"]
    x = ln(img_emb + out, params["ln1_g"], params["ln1_b"])
    ff = jax.nn.relu(x @ params["ffn_w1"].T + params["ffn_b1"])
    ff = ff @ params["ffn_w2"].T + params["ffn_b2"]
    x = ln(x + ff, params["ln2_g"], params["ln2_b"])
    logits = (x @ params["classifier_w"].T + params["classifier_b"]).squeeze(-1)
    return x, weights, logits, jax.nn.sigmoid(logits)


if __name__ == "__main__":
    B, P, N, D, heads, ff_ratio, num_classes = 2, 8, 8, 32, 4, 2, 1
    hidden = int(D * ff_ratio)

    key = jax.random.PRNGKey(0)
    ks = jax.random.split(key, 12)

    def init(k, shape, s=0.1):
        return s * jax.random.normal(k, shape, dtype=jnp.float32)

    params = {
        "in_proj_w": init(ks[0], (3 * D, D)),
        "in_proj_b": init(ks[1], (3 * D,)),
        "out_proj_w": init(ks[2], (D, D)),
        "out_proj_b": init(ks[3], (D,)),
        # module init is torch.zeros(heads); use a small deterministic non-zero ramp so
        # the per-head temperature path is actually exercised.
        "log_tau": jnp.linspace(-0.1, 0.1, heads, dtype=jnp.float32),
        "ln1_g": jnp.ones((D,), jnp.float32),
        "ln1_b": jnp.zeros((D,), jnp.float32),
        "ffn_w1": init(ks[4], (hidden, D)),
        "ffn_b1": init(ks[5], (hidden,)),
        "ffn_w2": init(ks[6], (D, hidden)),
        "ffn_b2": init(ks[7], (D,)),
        "ln2_g": jnp.ones((D,), jnp.float32),
        "ln2_b": jnp.zeros((D,), jnp.float32),
        "classifier_w": init(ks[8], (num_classes, D)),
        "classifier_b": init(ks[9], (num_classes,)),
    }

    img_emb = jax.random.normal(ks[10], (B, P, D), jnp.float32)
    txt_emb = jax.random.normal(ks[11], (B, N, D), jnp.float32)
    # second batch element has its last two text tokens masked out
    text_mask = jnp.arange(N)[None, :] < jnp.array([N, N - 2])[:, None]

    outs = cross_modal_block(img_emb, txt_emb, text_mask, params, heads=heads)
    outs = jax.block_until_ready(outs)

    refs = _reference(img_emb, txt_emb, text_mask, params, heads)
    names = ("x", "weights", "logits", "probs")
    # kernel feeds the MXU bf16 operands (f32 accumulate) and returns bf16 attention
    # weights -> compare against the pure-f32 reference with a bf16-appropriate tolerance.
    for name, o, r in zip(names, outs, refs):
        assert o.shape == r.shape, (name, o.shape, r.shape)
        err = float(jnp.max(jnp.abs(o.astype(jnp.float32) - r)))
        assert jnp.allclose(o.astype(jnp.float32), r, atol=5e-2, rtol=5e-2), (name, err)

    print("KERNEL_OK")
</pallas_src>

<mosaic_0001>
module attributes {stable_mosaic.version = 11 : i64} {
  func.func @_cross_modal_kernel(%arg0: i32, %arg1: i32, %arg2: memref<1x8x32xf32, #tpu.memory_space<vmem>>, %arg3: memref<1x8x32xbf16, #tpu.memory_space<vmem>>, %arg4: memref<1x1x8xf32, #tpu.memory_space<vmem>>, %arg5: memref<32x32xbf16, #tpu.memory_space<vmem>>, %arg6: memref<1x32xf32, #tpu.memory_space<vmem>>, %arg7: memref<32x32xbf16, #tpu.memory_space<vmem>>, %arg8: memref<1x32xf32, #tpu.memory_space<vmem>>, %arg9: memref<32x32xbf16, #tpu.memory_space<vmem>>, %arg10: memref<1x32xf32, #tpu.memory_space<vmem>>, %arg11: memref<32x32xbf16, #tpu.memory_space<vmem>>, %arg12: memref<1x32xf32, #tpu.memory_space<vmem>>, %arg13: memref<1x32xf32, #tpu.memory_space<vmem>>, %arg14: memref<1x32xf32, #tpu.memory_space<vmem>>, %arg15: memref<32x64xbf16, #tpu.memory_space<vmem>>, %arg16: memref<1x64xf32, #tpu.memory_space<vmem>>, %arg17: memref<64x32xbf16, #tpu.memory_space<vmem>>, %arg18: memref<1x32xf32, #tpu.memory_space<vmem>>, %arg19: memref<1x32xf32, #tpu.memory_space<vmem>>, %arg20: memref<1x32xf32, #tpu.memory_space<vmem>>, %arg21: memref<1x32xf32, #tpu.memory_space<vmem>>, %arg22: memref<1x1xf32, #tpu.memory_space<vmem>>, %arg23: memref<1x8x32xf32, #tpu.memory_space<vmem>>, %arg24: memref<1x4x8x8xbf16, #tpu.memory_space<vmem>>, %arg25: memref<1x2x8xf32, #tpu.memory_space<vmem>>, %arg26: memref<1x8x32xbf16, #tpu.memory_space<vmem>>, %arg27: memref<1x8x32xbf16, #tpu.memory_space<vmem>>) attributes {dimension_semantics = [#tpu.dimension_semantics<parallel>, #tpu.dimension_semantics<arbitrary>], iteration_bounds = array<i64: 2, 1>, scalar_prefetch = 0 : i64, scratch_operands = 2 : i64, tpu.core_type = #tpu.core_type<tc>, window_params = [{transform_indices = @transform_0, window_bounds = array<i64: 1, 8, 32>}, {transform_indices = @transform_1, window_bounds = array<i64: 1, 8, 32>}, {transform_indices = @transform_2, window_bounds = array<i64: 1, 1, 8>}, {pipeline_mode = #tpu.pipeline_mode<synchronous>, transform_indices = @transform_3, window_bounds = array<i64: 32, 32>}, {pipeline_mode = #tpu.pipeline_mode<synchronous>, transform_indices = @transform_4, window_bounds = array<i64: 1, 32>}, {pipeline_mode = #tpu.pipeline_mode<synchronous>, transform_indices = @transform_5, window_bounds = array<i64: 32, 32>}, {pipeline_mode = #tpu.pipeline_mode<synchronous>, transform_indices = @transform_6, window_bounds = array<i64: 1, 32>}, {pipeline_mode = #tpu.pipeline_mode<synchronous>, transform_indices = @transform_7, window_bounds = array<i64: 32, 32>}, {pipeline_mode = #tpu.pipeline_mode<synchronous>, transform_indices = @transform_8, window_bounds = array<i64: 1, 32>}, {pipeline_mode = #tpu.pipeline_mode<synchronous>, transform_indices = @transform_9, window_bounds = array<i64: 32, 32>}, {pipeline_mode = #tpu.pipeline_mode<synchronous>, transform_indices = @transform_10, window_bounds = array<i64: 1, 32>}, {pipeline_mode = #tpu.pipeline_mode<synchronous>, transform_indices = @transform_11, window_bounds = array<i64: 1, 32>}, {pipeline_mode = #tpu.pipeline_mode<synchronous>, transform_indices = @transform_12, window_bounds = array<i64: 1, 32>}, {pipeline_mode = #tpu.pipeline_mode<synchronous>, transform_indices = @transform_13, window_bounds = array<i64: 32, 64>}, {pipeline_mode = #tpu.pipeline_mode<synchronous>, transform_indices = @transform_14, window_bounds = array<i64: 1, 64>}, {pipeline_mode = #tpu.pipeline_mode<synchronous>, transform_indices = @transform_15, window_bounds = array<i64: 64, 32>}, {pipeline_mode = #tpu.pipeline_mode<synchronous>, transform_indices = @transform_16, window_bounds = array<i64: 1, 32>}, {pipeline_mode = #tpu.pipeline_mode<synchronous>, transform_indices = @transform_17, window_bounds = array<i64: 1, 32>}, {pipeline_mode = #tpu.pipeline_mode<synchronous>, transform_indices = @transform_18, window_bounds = array<i64: 1, 32>}, {pipeline_mode = #tpu.pipeline_mode<synchronous>, transform_indices = @transform_19, window_bounds = array<i64: 1, 32>}, {pipeline_mode = #tpu.pipeline_mode<synchronous>, transform_indices = @transform_20, window_bounds = array<i64: 1, 1>}, {transform_indices = @transform_21, window_bounds = array<i64: 1, 8, 32>}, {transform_indices = @transform_22, window_bounds = array<i64: 1, 4, 8, 8>}, {transform_indices = @transform_23, window_bounds = array<i64: 1, 2, 8>}]} {
    %c0_i32 = arith.constant 0 : i32
    %0 = arith.cmpi eq, %arg1, %c0_i32 : i32
    %1 = arith.extui %0 : i1 to i32
    %c0_i32_0 = arith.constant 0 : i32
    %2 = arith.cmpi ne, %1, %c0_i32_0 : i32
    scf.if %2 {
      %c0_106 = arith.constant 0 : index
      %c0_107 = arith.constant 0 : index
      %c0_108 = arith.constant 0 : index
      %197 = vector.load %arg3[%c0_106, %c0_107, %c0_108] : memref<1x8x32xbf16, #tpu.memory_space<vmem>>, vector<1x8x32xbf16>
      %198 = vector.shape_cast %197 : vector<1x8x32xbf16> to vector<8x32xbf16>
      %c0_109 = arith.constant 0 : index
      %c0_110 = arith.constant 0 : index
      %199 = vector.load %arg7[%c0_109, %c0_110] : memref<32x32xbf16, #tpu.memory_space<vmem>>, vector<32x32xbf16>
      %cst_111 = arith.constant dense<0.000000e+00> : vector<8x32xf32>
      %200 = tpu.matmul %198, %199, %cst_111 {dimension_numbers = #tpu.dot_dimension_numbers<[1], [0], [0], [1], [0, 0, 1, 1], [], []>} : vector<8x32xbf16>, vector<32x32xbf16>, vector<8x32xf32> -> vector<8x32xf32>
      %c0_112 = arith.constant 0 : index
      %c0_113 = arith.constant 0 : index
      %201 = vector.load %arg8[%c0_112, %c0_113] : memref<1x32xf32, #tpu.memory_space<vmem>>, vector<1x32xf32>
      %202 = vector.broadcast %201 : vector<1x32xf32> to vector<8x32xf32>
      %203 = arith.addf %200, %202 : vector<8x32xf32>
      %c0_114 = arith.constant 0 : index
      %c0_115 = arith.constant 0 : index
      %204 = vector.load %arg9[%c0_114, %c0_115] : memref<32x32xbf16, #tpu.memory_space<vmem>>, vector<32x32xbf16>
      %cst_116 = arith.constant dense<0.000000e+00> : vector<8x32xf32>
      %205 = tpu.matmul %198, %204, %cst_116 {dimension_numbers = #tpu.dot_dimension_numbers<[1], [0], [0], [1], [0, 0, 1, 1], [], []>} : vector<8x32xbf16>, vector<32x32xbf16>, vector<8x32xf32> -> vector<8x32xf32>
      %c0_117 = arith.constant 0 : index
      %c0_118 = arith.constant 0 : index
      %206 = vector.load %arg10[%c0_117, %c0_118] : memref<1x32xf32, #tpu.memory_space<vmem>>, vector<1x32xf32>
      %207 = vector.broadcast %206 : vector<1x32xf32> to vector<8x32xf32>
      %208 = arith.addf %205, %207 : vector<8x32xf32>
      %209 = vector.shape_cast %203 : vector<8x32xf32> to vector<1x8x32xf32>
      %210 = arith.truncf %209 : vector<1x8x32xf32> to vector<1x8x32xbf16>
      %c0_119 = arith.constant 0 : index
      %c0_120 = arith.constant 0 : index
      %c0_121 = arith.constant 0 : index
      %211 = vector.load %arg26[%c0_119, %c0_120, %c0_121] : memref<1x8x32xbf16, #tpu.memory_space<vmem>>, vector<1x8x32xbf16>
      tpu.vector_store %arg26[%c0_119, %c0_120, %c0_121], %210 {strides = array<i32>} : memref<1x8x32xbf16, #tpu.memory_space<vmem>>, vector<1x8x32xbf16>,
      %212 = vector.shape_cast %208 : vector<8x32xf32> to vector<1x8x32xf32>
      %213 = arith.truncf %212 : vector<1x8x32xf32> to vector<1x8x32xbf16>
      %c0_122 = arith.constant 0 : index
      %c0_123 = arith.constant 0 : index
      %c0_124 = arith.constant 0 : index
      %214 = vector.load %arg27[%c0_122, %c0_123, %c0_124] : memref<1x8x32xbf16, #tpu.memory_space<vmem>>, vector<1x8x32xbf16>
      tpu.vector_store %arg27[%c0_122, %c0_123, %c0_124], %213 {strides = array<i32>} : memref<1x8x32xbf16, #tpu.memory_space<vmem>>, vector<1x8x32xbf16>,
    } else {
    }
    %c0 = arith.constant 0 : index
    %c0_1 = arith.constant 0 : index
    %c0_2 = arith.constant 0 : index
    %3 = vector.load %arg2[%c0, %c0_1, %c0_2] : memref<1x8x32xf32, #tpu.memory_space<vmem>>, vector<1x8x32xf32>
    %4 = vector.shape_cast %3 : vector<1x8x32xf32> to vector<8x32xf32>
    %5 = arith.truncf %4 : vector<8x32xf32> to vector<8x32xbf16>
    %c0_3 = arith.constant 0 : index
    %c0_4 = arith.constant 0 : index
    %6 = vector.load %arg5[%c0_3, %c0_4] : memref<32x32xbf16, #tpu.memory_space<vmem>>, vector<32x32xbf16>
    %cst = arith.constant dense<0.000000e+00> : vector<8x32xf32>
    %7 = tpu.matmul %5, %6, %cst {dimension_numbers = #tpu.dot_dimension_numbers<[1], [0], [0], [1], [0, 0, 1, 1], [], []>} : vector<8x32xbf16>, vector<32x32xbf16>, vector<8x32xf32> -> vector<8x32xf32>
    %c0_5 = arith.constant 0 : index
    %c0_6 = arith.constant 0 : index
    %8 = vector.load %arg6[%c0_5, %c0_6] : memref<1x32xf32, #tpu.memory_space<vmem>>, vector<1x32xf32>
    %9 = vector.broadcast %8 : vector<1x32xf32> to vector<8x32xf32>
    %10 = arith.addf %7, %9 : vector<8x32xf32>
    %11 = vector.shape_cast %10 : vector<8x32xf32> to vector<1x8x32xf32>
    %c0_7 = arith.constant 0 : index
    %c0_8 = arith.constant 0 : index
    %c0_9 = arith.constant 0 : index
    %12 = vector.load %arg4[%c0_7, %c0_8, %c0_9] : memref<1x1x8xf32, #tpu.memory_space<vmem>>, vector<1x1x8xf32>
    %13 = vector.shape_cast %12 : vector<1x1x8xf32> to vector<1x1x8xf32>
    %14 = vector.broadcast %13 : vector<1x1x8xf32> to vector<1x8x8xf32>
    %15 = vector.extract_strided_slice %11 {offsets = [0, 0, 0], sizes = [1, 8, 8], strides = [1, 1, 1]} : vector<1x8x32xf32> to vector<1x8x8xf32>
    %16 = arith.truncf %15 : vector<1x8x8xf32> to vector<1x8x8xbf16>
    %c0_10 = arith.constant 0 : index
    %c0_11 = arith.constant 0 : index
    %c0_12 = arith.constant 0 : index
    %17 = vector.load %arg26[%c0_10, %c0_11, %c0_12] : memref<1x8x32xbf16, #tpu.memory_space<vmem>>, vector<1x8x8xbf16>
    %c0_13 = arith.constant 0 : index
    %c0_14 = arith.constant 0 : index
    %c0_15 = arith.constant 0 : index
    %18 = vector.load %arg27[%c0_13, %c0_14, %c0_15] : memref<1x8x32xbf16, #tpu.memory_space<vmem>>, vector<1x8x8xbf16>
    "tpu.trace_start"() <{level = 10 : i32, message = "bpd,bnd->bpn"}> : () -> ()
    %cst_16 = arith.constant dense<0.000000e+00> : vector<1x8x8xf32>
    %19 = tpu.matmul %16, %17, %cst_16 {dimension_numbers = #tpu.dot_dimension_numbers<[2], [2], [1], [1], [0, 0, 0, 1, 1, 1], [0], [0]>} : vector<1x8x8xbf16>, vector<1x8x8xbf16>, vector<1x8x8xf32> -> vector<1x8x8xf32>
    "tpu.trace_stop"() : () -> ()
    %20 = arith.addf %19, %14 : vector<1x8x8xf32>
    %cst_17 = arith.constant dense<0xFF800000> : vector<1x8xf32>
    %21 = vector.multi_reduction <maximumf>, %20, %cst_17 [2] : vector<1x8x8xf32> to vector<1x8xf32>
    %22 = vector.shape_cast %21 : vector<1x8xf32> to vector<1x8x1xf32>
    %23 = vector.broadcast %22 : vector<1x8x1xf32> to vector<1x8x8xf32>
    %24 = arith.subf %20, %23 : vector<1x8x8xf32>
    %25 = math.exp %24 : vector<1x8x8xf32>
    %cst_18 = arith.constant dense<0.000000e+00> : vector<1x8xf32>
    %26 = vector.multi_reduction <add>, %25, %cst_18 [2] : vector<1x8x8xf32> to vector<1x8xf32>
    %27 = vector.shape_cast %26 : vector<1x8xf32> to vector<1x8x1xf32>
    %28 = tpu.reciprocal %27 {approx = true} : vector<1x8x1xf32> -> vector<1x8x1xf32>
    %29 = vector.broadcast %28 : vector<1x8x1xf32> to vector<1x8x8xf32>
    %30 = arith.mulf %25, %29 : vector<1x8x8xf32>
    %31 = arith.truncf %30 : vector<1x8x8xf32> to vector<1x8x8xbf16>
    %c0_19 = arith.constant 0 : index
    %c0_20 = arith.constant 0 : index
    %c0_21 = arith.constant 0 : index
    %c0_22 = arith.constant 0 : index
    %32 = vector.load %arg24[%c0_19, %c0_20, %c0_21, %c0_22] : memref<1x4x8x8xbf16, #tpu.memory_space<vmem>>, vector<1x1x8x8xbf16>
    %33 = vector.shape_cast %32 : vector<1x1x8x8xbf16> to vector<1x8x8xbf16>
    %34 = vector.shape_cast %31 : vector<1x8x8xbf16> to vector<1x1x8x8xbf16>
    tpu.vector_store %arg24[%c0_19, %c0_20, %c0_21, %c0_22], %34 {strides = array<i32>} : memref<1x4x8x8xbf16, #tpu.memory_space<vmem>>, vector<1x1x8x8xbf16>,
    %35 = arith.truncf %30 : vector<1x8x8xf32> to vector<1x8x8xbf16>
    "tpu.trace_start"() <{level = 10 : i32, message = "bpn,bnd->bpd"}> : () -> ()
    %cst_23 = arith.constant dense<0.000000e+00> : vector<1x8x8xf32>
    %36 = tpu.matmul %35, %18, %cst_23 {dimension_numbers = #tpu.dot_dimension_numbers<[2], [1], [1], [2], [0, 0, 0, 1, 1, 2], [0], [0]>} : vector<1x8x8xbf16>, vector<1x8x8xbf16>, vector<1x8x8xf32> -> vector<1x8x8xf32>
    "tpu.trace_stop"() : () -> ()
    %37 = arith.truncf %36 : vector<1x8x8xf32> to vector<1x8x8xbf16>
    %38 = vector.extract_strided_slice %11 {offsets = [0, 0, 8], sizes = [1, 8, 8], strides = [1, 1, 1]} : vector<1x8x32xf32> to vector<1x8x8xf32>
    %39 = arith.truncf %38 : vector<1x8x8xf32> to vector<1x8x8xbf16>
    %c0_24 = arith.constant 0 : index
    %c0_25 = arith.constant 0 : index
    %c8 = arith.constant 8 : index
    %40 = vector.load %arg26[%c0_24, %c0_25, %c8] : memref<1x8x32xbf16, #tpu.memory_space<vmem>>, vector<1x8x8xbf16>
    %c0_26 = arith.constant 0 : index
    %c0_27 = arith.constant 0 : index
    %c8_28 = arith.constant 8 : index
    %41 = vector.load %arg27[%c0_26, %c0_27, %c8_28] : memref<1x8x32xbf16, #tpu.memory_space<vmem>>, vector<1x8x8xbf16>
    "tpu.trace_start"() <{level = 10 : i32, message = "bpd,bnd->bpn"}> : () -> ()
    %cst_29 = arith.constant dense<0.000000e+00> : vector<1x8x8xf32>
    %42 = tpu.matmul %39, %40, %cst_29 {dimension_numbers = #tpu.dot_dimension_numbers<[2], [2], [1], [1], [0, 0, 0, 1, 1, 1], [0], [0]>} : vector<1x8x8xbf16>, vector<1x8x8xbf16>, vector<1x8x8xf32> -> vector<1x8x8xf32>
    "tpu.trace_stop"() : () -> ()
    %43 = arith.addf %42, %14 : vector<1x8x8xf32>
    %cst_30 = arith.constant dense<0xFF800000> : vector<1x8xf32>
    %44 = vector.multi_reduction <maximumf>, %43, %cst_30 [2] : vector<1x8x8xf32> to vector<1x8xf32>
    %45 = vector.shape_cast %44 : vector<1x8xf32> to vector<1x8x1xf32>
    %46 = vector.broadcast %45 : vector<1x8x1xf32> to vector<1x8x8xf32>
    %47 = arith.subf %43, %46 : vector<1x8x8xf32>
    %48 = math.exp %47 : vector<1x8x8xf32>
    %cst_31 = arith.constant dense<0.000000e+00> : vector<1x8xf32>
    %49 = vector.multi_reduction <add>, %48, %cst_31 [2] : vector<1x8x8xf32> to vector<1x8xf32>
    %50 = vector.shape_cast %49 : vector<1x8xf32> to vector<1x8x1xf32>
    %51 = tpu.reciprocal %50 {approx = true} : vector<1x8x1xf32> -> vector<1x8x1xf32>
    %52 = vector.broadcast %51 : vector<1x8x1xf32> to vector<1x8x8xf32>
    %53 = arith.mulf %48, %52 : vector<1x8x8xf32>
    %54 = arith.truncf %53 : vector<1x8x8xf32> to vector<1x8x8xbf16>
    %c0_32 = arith.constant 0 : index
    %c1 = arith.constant 1 : index
    %c0_33 = arith.constant 0 : index
    %c0_34 = arith.constant 0 : index
    %55 = vector.load %arg24[%c0_32, %c1, %c0_33, %c0_34] : memref<1x4x8x8xbf16, #tpu.memory_space<vmem>>, vector<1x1x8x8xbf16>
    %56 = vector.shape_cast %55 : vector<1x1x8x8xbf16> to vector<1x8x8xbf16>
    %57 = vector.shape_cast %54 : vector<1x8x8xbf16> to vector<1x1x8x8xbf16>
    tpu.vector_store %arg24[%c0_32, %c1, %c0_33, %c0_34], %57 {strides = array<i32>} : memref<1x4x8x8xbf16, #tpu.memory_space<vmem>>, vector<1x1x8x8xbf16>,
    %58 = arith.truncf %53 : vector<1x8x8xf32> to vector<1x8x8xbf16>
    "tpu.trace_start"() <{level = 10 : i32, message = "bpn,bnd->bpd"}> : () -> ()
    %cst_35 = arith.constant dense<0.000000e+00> : vector<1x8x8xf32>
    %59 = tpu.matmul %58, %41, %cst_35 {dimension_numbers = #tpu.dot_dimension_numbers<[2], [1], [1], [2], [0, 0, 0, 1, 1, 2], [0], [0]>} : vector<1x8x8xbf16>, vector<1x8x8xbf16>, vector<1x8x8xf32> -> vector<1x8x8xf32>
    "tpu.trace_stop"() : () -> ()
    %60 = arith.truncf %59 : vector<1x8x8xf32> to vector<1x8x8xbf16>
    %61 = vector.extract_strided_slice %11 {offsets = [0, 0, 16], sizes = [1, 8, 8], strides = [1, 1, 1]} : vector<1x8x32xf32> to vector<1x8x8xf32>
    %62 = arith.truncf %61 : vector<1x8x8xf32> to vector<1x8x8xbf16>
    %c0_36 = arith.constant 0 : index
    %c0_37 = arith.constant 0 : index
    %c16 = arith.constant 16 : index
    %63 = vector.load %arg26[%c0_36, %c0_37, %c16] : memref<1x8x32xbf16, #tpu.memory_space<vmem>>, vector<1x8x8xbf16>
    %c0_38 = arith.constant 0 : index
    %c0_39 = arith.constant 0 : index
    %c16_40 = arith.constant 16 : index
    %64 = vector.load %arg27[%c0_38, %c0_39, %c16_40] : memref<1x8x32xbf16, #tpu.memory_space<vmem>>, vector<1x8x8xbf16>
    "tpu.trace_start"() <{level = 10 : i32, message = "bpd,bnd->bpn"}> : () -> ()
    %cst_41 = arith.constant dense<0.000000e+00> : vector<1x8x8xf32>
    %65 = tpu.matmul %62, %63, %cst_41 {dimension_numbers = #tpu.dot_dimension_numbers<[2], [2], [1], [1], [0, 0, 0, 1, 1, 1], [0], [0]>} : vector<1x8x8xbf16>, vector<1x8x8xbf16>, vector<1x8x8xf32> -> vector<1x8x8xf32>
    "tpu.trace_stop"() : () -> ()
    %66 = arith.addf %65, %14 : vector<1x8x8xf32>
    %cst_42 = arith.constant dense<0xFF800000> : vector<1x8xf32>
    %67 = vector.multi_reduction <maximumf>, %66, %cst_42 [2] : vector<1x8x8xf32> to vector<1x8xf32>
    %68 = vector.shape_cast %67 : vector<1x8xf32> to vector<1x8x1xf32>
    %69 = vector.broadcast %68 : vector<1x8x1xf32> to vector<1x8x8xf32>
    %70 = arith.subf %66, %69 : vector<1x8x8xf32>
    %71 = math.exp %70 : vector<1x8x8xf32>
    %cst_43 = arith.constant dense<0.000000e+00> : vector<1x8xf32>
    %72 = vector.multi_reduction <add>, %71, %cst_43 [2] : vector<1x8x8xf32> to vector<1x8xf32>
    %73 = vector.shape_cast %72 : vector<1x8xf32> to vector<1x8x1xf32>
    %74 = tpu.reciprocal %73 {approx = true} : vector<1x8x1xf32> -> vector<1x8x1xf32>
    %75 = vector.broadcast %74 : vector<1x8x1xf32> to vector<1x8x8xf32>
    %76 = arith.mulf %71, %75 : vector<1x8x8xf32>
    %77 = arith.truncf %76 : vector<1x8x8xf32> to vector<1x8x8xbf16>
    %c0_44 = arith.constant 0 : index
    %c2 = arith.constant 2 : index
    %c0_45 = arith.constant 0 : index
    %c0_46 = arith.constant 0 : index
    %78 = vector.load %arg24[%c0_44, %c2, %c0_45, %c0_46] : memref<1x4x8x8xbf16, #tpu.memory_space<vmem>>, vector<1x1x8x8xbf16>
    %79 = vector.shape_cast %78 : vector<1x1x8x8xbf16> to vector<1x8x8xbf16>
    %80 = vector.shape_cast %77 : vector<1x8x8xbf16> to vector<1x1x8x8xbf16>
    tpu.vector_store %arg24[%c0_44, %c2, %c0_45, %c0_46], %80 {strides = array<i32>} : memref<1x4x8x8xbf16, #tpu.memory_space<vmem>>, vector<1x1x8x8xbf16>,
    %81 = arith.truncf %76 : vector<1x8x8xf32> to vector<1x8x8xbf16>
    "tpu.trace_start"() <{level = 10 : i32, message = "bpn,bnd->bpd"}> : () -> ()
    %cst_47 = arith.constant dense<0.000000e+00> : vector<1x8x8xf32>
    %82 = tpu.matmul %81, %64, %cst_47 {dimension_numbers = #tpu.dot_dimension_numbers<[2], [1], [1], [2], [0, 0, 0, 1, 1, 2], [0], [0]>} : vector<1x8x8xbf16>, vector<1x8x8xbf16>, vector<1x8x8xf32> -> vector<1x8x8xf32>
    "tpu.trace_stop"() : () -> ()
    %83 = arith.truncf %82 : vector<1x8x8xf32> to vector<1x8x8xbf16>
    %84 = vector.extract_strided_slice %11 {offsets = [0, 0, 24], sizes = [1, 8, 8], strides = [1, 1, 1]} : vector<1x8x32xf32> to vector<1x8x8xf32>
    %85 = arith.truncf %84 : vector<1x8x8xf32> to vector<1x8x8xbf16>
    %c0_48 = arith.constant 0 : index
    %c0_49 = arith.constant 0 : index
    %c24 = arith.constant 24 : index
    %86 = vector.load %arg26[%c0_48, %c0_49, %c24] : memref<1x8x32xbf16, #tpu.memory_space<vmem>>, vector<1x8x8xbf16>
    %c0_50 = arith.constant 0 : index
    %c0_51 = arith.constant 0 : index
    %c24_52 = arith.constant 24 : index
    %87 = vector.load %arg27[%c0_50, %c0_51, %c24_52] : memref<1x8x32xbf16, #tpu.memory_space<vmem>>, vector<1x8x8xbf16>
    "tpu.trace_start"() <{level = 10 : i32, message = "bpd,bnd->bpn"}> : () -> ()
    %cst_53 = arith.constant dense<0.000000e+00> : vector<1x8x8xf32>
    %88 = tpu.matmul %85, %86, %cst_53 {dimension_numbers = #tpu.dot_dimension_numbers<[2], [2], [1], [1], [0, 0, 0, 1, 1, 1], [0], [0]>} : vector<1x8x8xbf16>, vector<1x8x8xbf16>, vector<1x8x8xf32> -> vector<1x8x8xf32>
    "tpu.trace_stop"() : () -> ()
    %89 = arith.addf %88, %14 : vector<1x8x8xf32>
    %cst_54 = arith.constant dense<0xFF800000> : vector<1x8xf32>
    %90 = vector.multi_reduction <maximumf>, %89, %cst_54 [2] : vector<1x8x8xf32> to vector<1x8xf32>
    %91 = vector.shape_cast %90 : vector<1x8xf32> to vector<1x8x1xf32>
    %92 = vector.broadcast %91 : vector<1x8x1xf32> to vector<1x8x8xf32>
    %93 = arith.subf %89, %92 : vector<1x8x8xf32>
    %94 = math.exp %93 : vector<1x8x8xf32>
    %cst_55 = arith.constant dense<0.000000e+00> : vector<1x8xf32>
    %95 = vector.multi_reduction <add>, %94, %cst_55 [2] : vector<1x8x8xf32> to vector<1x8xf32>
    %96 = vector.shape_cast %95 : vector<1x8xf32> to vector<1x8x1xf32>
    %97 = tpu.reciprocal %96 {approx = true} : vector<1x8x1xf32> -> vector<1x8x1xf32>
    %98 = vector.broadcast %97 : vector<1x8x1xf32> to vector<1x8x8xf32>
    %99 = arith.mulf %94, %98 : vector<1x8x8xf32>
    %100 = arith.truncf %99 : vector<1x8x8xf32> to vector<1x8x8xbf16>
    %c0_56 = arith.constant 0 : index
    %c3 = arith.constant 3 : index
    %c0_57 = arith.constant 0 : index
    %c0_58 = arith.constant 0 : index
    %101 = vector.load %arg24[%c0_56, %c3, %c0_57, %c0_58] : memref<1x4x8x8xbf16, #tpu.memory_space<vmem>>, vector<1x1x8x8xbf16>
    %102 = vector.shape_cast %101 : vector<1x1x8x8xbf16> to vector<1x8x8xbf16>
    %103 = vector.shape_cast %100 : vector<1x8x8xbf16> to vector<1x1x8x8xbf16>
    tpu.vector_store %arg24[%c0_56, %c3, %c0_57, %c0_58], %103 {strides = array<i32>} : memref<1x4x8x8xbf16, #tpu.memory_space<vmem>>, vector<1x1x8x8xbf16>,
    %104 = arith.truncf %99 : vector<1x8x8xf32> to vector<1x8x8xbf16>
    "tpu.trace_start"() <{level = 10 : i32, message = "bpn,bnd->bpd"}> : () -> ()
    %cst_59 = arith.constant dense<0.000000e+00> : vector<1x8x8xf32>
    %105 = tpu.matmul %104, %87, %cst_59 {dimension_numbers = #tpu.dot_dimension_numbers<[2], [1], [1], [2], [0, 0, 0, 1, 1, 2], [0], [0]>} : vector<1x8x8xbf16>, vector<1x8x8xbf16>, vector<1x8x8xf32> -> vector<1x8x8xf32>
    "tpu.trace_stop"() : () -> ()
    %106 = arith.truncf %105 : vector<1x8x8xf32> to vector<1x8x8xbf16>
    %107 = tpu.concatenate %37, %60, %83, %106 in 2 : vector<1x8x8xbf16>, vector<1x8x8xbf16>, vector<1x8x8xbf16>, vector<1x8x8xbf16> -> vector<1x8x32xbf16>
    %108 = vector.shape_cast %107 : vector<1x8x32xbf16> to vector<8x32xbf16>
    %c0_60 = arith.constant 0 : index
    %c0_61 = arith.constant 0 : index
    %109 = vector.load %arg11[%c0_60, %c0_61] : memref<32x32xbf16, #tpu.memory_space<vmem>>, vector<32x32xbf16>
    %cst_62 = arith.constant dense<0.000000e+00> : vector<8x32xf32>
    %110 = tpu.matmul %108, %109, %cst_62 {dimension_numbers = #tpu.dot_dimension_numbers<[1], [0], [0], [1], [0, 0, 1, 1], [], []>} : vector<8x32xbf16>, vector<32x32xbf16>, vector<8x32xf32> -> vector<8x32xf32>
    %c0_63 = arith.constant 0 : index
    %c0_64 = arith.constant 0 : index
    %111 = vector.load %arg12[%c0_63, %c0_64] : memref<1x32xf32, #tpu.memory_space<vmem>>, vector<1x32xf32>
    %112 = vector.broadcast %111 : vector<1x32xf32> to vector<8x32xf32>
    %113 = arith.addf %110, %112 : vector<8x32xf32>
    %114 = arith.addf %4, %113 : vector<8x32xf32>
    %cst_65 = arith.constant dense<0.000000e+00> : vector<8xf32>
    %115 = vector.multi_reduction <add>, %114, %cst_65 [1] : vector<8x32xf32> to vector<8xf32>
    %116 = vector.shape_cast %115 : vector<8xf32> to vector<8x1xf32>
    %cst_66 = arith.constant 3.200000e+01 : f32
    %117 = vector.broadcast %cst_66 : f32 to vector<8x1xf32>
    %118 = arith.divf %116, %117 : vector<8x1xf32>
    %119 = vector.broadcast %118 : vector<8x1xf32> to vector<8x32xf32>
    %120 = arith.subf %114, %119 : vector<8x32xf32>
    %121 = arith.mulf %120, %120 : vector<8x32xf32>
    %cst_67 = arith.constant dense<0.000000e+00> : vector<8xf32>
    %122 = vector.multi_reduction <add>, %121, %cst_67 [1] : vector<8x32xf32> to vector<8xf32>
    %123 = vector.shape_cast %122 : vector<8xf32> to vector<8x1xf32>
    %cst_68 = arith.constant 3.200000e+01 : f32
    %124 = vector.broadcast %cst_68 : f32 to vector<8x1xf32>
    %125 = arith.divf %123, %124 : vector<8x1xf32>
    %126 = vector.broadcast %118 : vector<8x1xf32> to vector<8x32xf32>
    %127 = arith.subf %114, %126 : vector<8x32xf32>
    %cst_69 = arith.constant 9.99999974E-6 : f32
    %128 = vector.broadcast %cst_69 : f32 to vector<8x1xf32>
    %129 = arith.addf %125, %128 : vector<8x1xf32>
    %130 = math.rsqrt %129 : vector<8x1xf32>
    %131 = vector.broadcast %130 : vector<8x1xf32> to vector<8x32xf32>
    %132 = arith.mulf %127, %131 : vector<8x32xf32>
    %c0_70 = arith.constant 0 : index
    %c0_71 = arith.constant 0 : index
    %133 = vector.load %arg13[%c0_70, %c0_71] : memref<1x32xf32, #tpu.memory_space<vmem>>, vector<1x32xf32>
    %134 = vector.broadcast %133 : vector<1x32xf32> to vector<8x32xf32>
    %135 = arith.mulf %132, %134 : vector<8x32xf32>
    %c0_72 = arith.constant 0 : index
    %c0_73 = arith.constant 0 : index
    %136 = vector.load %arg14[%c0_72, %c0_73] : memref<1x32xf32, #tpu.memory_space<vmem>>, vector<1x32xf32>
    %137 = vector.broadcast %136 : vector<1x32xf32> to vector<8x32xf32>
    %138 = arith.addf %135, %137 : vector<8x32xf32>
    %139 = arith.truncf %138 : vector<8x32xf32> to vector<8x32xbf16>
    %c0_74 = arith.constant 0 : index
    %c0_75 = arith.constant 0 : index
    %140 = vector.load %arg15[%c0_74, %c0_75] : memref<32x64xbf16, #tpu.memory_space<vmem>>, vector<32x64xbf16>
    %cst_76 = arith.constant dense<0.000000e+00> : vector<8x64xf32>
    %141 = tpu.matmul %139, %140, %cst_76 {dimension_numbers = #tpu.dot_dimension_numbers<[1], [0], [0], [1], [0, 0, 1, 1], [], []>} : vector<8x32xbf16>, vector<32x64xbf16>, vector<8x64xf32> -> vector<8x64xf32>
    %c0_77 = arith.constant 0 : index
    %c0_78 = arith.constant 0 : index
    %142 = vector.load %arg16[%c0_77, %c0_78] : memref<1x64xf32, #tpu.memory_space<vmem>>, vector<1x64xf32>
    %143 = vector.broadcast %142 : vector<1x64xf32> to vector<8x64xf32>
    %144 = arith.addf %141, %143 : vector<8x64xf32>
    %cst_79 = arith.constant 0.000000e+00 : f32
    %145 = vector.broadcast %cst_79 : f32 to vector<8x64xf32>
    %146 = arith.maximumf %144, %145 : vector<8x64xf32>
    %147 = arith.truncf %146 : vector<8x64xf32> to vector<8x64xbf16>
    %c0_80 = arith.constant 0 : index
    %c0_81 = arith.constant 0 : index
    %148 = vector.load %arg17[%c0_80, %c0_81] : memref<64x32xbf16, #tpu.memory_space<vmem>>, vector<64x32xbf16>
    %cst_82 = arith.constant dense<0.000000e+00> : vector<8x32xf32>
    %149 = tpu.matmul %147, %148, %cst_82 {dimension_numbers = #tpu.dot_dimension_numbers<[1], [0], [0], [1], [0, 0, 1, 1], [], []>} : vector<8x64xbf16>, vector<64x32xbf16>, vector<8x32xf32> -> vector<8x32xf32>
    %c0_83 = arith.constant 0 : index
    %c0_84 = arith.constant 0 : index
    %150 = vector.load %arg18[%c0_83, %c0_84] : memref<1x32xf32, #tpu.memory_space<vmem>>, vector<1x32xf32>
    %151 = vector.broadcast %150 : vector<1x32xf32> to vector<8x32xf32>
    %152 = arith.addf %149, %151 : vector<8x32xf32>
    %153 = arith.addf %138, %152 : vector<8x32xf32>
    %cst_85 = arith.constant dense<0.000000e+00> : vector<8xf32>
    %154 = vector.multi_reduction <add>, %153, %cst_85 [1] : vector<8x32xf32> to vector<8xf32>
    %155 = vector.shape_cast %154 : vector<8xf32> to vector<8x1xf32>
    %cst_86 = arith.constant 3.200000e+01 : f32
    %156 = vector.broadcast %cst_86 : f32 to vector<8x1xf32>
    %157 = arith.divf %155, %156 : vector<8x1xf32>
    %158 = vector.broadcast %157 : vector<8x1xf32> to vector<8x32xf32>
    %159 = arith.subf %153, %158 : vector<8x32xf32>
    %160 = arith.mulf %159, %159 : vector<8x32xf32>
    %cst_87 = arith.constant dense<0.000000e+00> : vector<8xf32>
    %161 = vector.multi_reduction <add>, %160, %cst_87 [1] : vector<8x32xf32> to vector<8xf32>
    %162 = vector.shape_cast %161 : vector<8xf32> to vector<8x1xf32>
    %cst_88 = arith.constant 3.200000e+01 : f32
    %163 = vector.broadcast %cst_88 : f32 to vector<8x1xf32>
    %164 = arith.divf %162, %163 : vector<8x1xf32>
    %165 = vector.broadcast %157 : vector<8x1xf32> to vector<8x32xf32>
    %166 = arith.subf %153, %165 : vector<8x32xf32>
    %cst_89 = arith.constant 9.99999974E-6 : f32
    %167 = vector.broadcast %cst_89 : f32 to vector<8x1xf32>
    %168 = arith.addf %164, %167 : vector<8x1xf32>
    %169 = math.rsqrt %168 : vector<8x1xf32>
    %170 = vector.broadcast %169 : vector<8x1xf32> to vector<8x32xf32>
    %171 = arith.mulf %166, %170 : vector<8x32xf32>
    %c0_90 = arith.constant 0 : index
    %c0_91 = arith.constant 0 : index
    %172 = vector.load %arg19[%c0_90, %c0_91] : memref<1x32xf32, #tpu.memory_space<vmem>>, vector<1x32xf32>
    %173 = vector.broadcast %172 : vector<1x32xf32> to vector<8x32xf32>
    %174 = arith.mulf %171, %173 : vector<8x32xf32>
    %c0_92 = arith.constant 0 : index
    %c0_93 = arith.constant 0 : index
    %175 = vector.load %arg20[%c0_92, %c0_93] : memref<1x32xf32, #tpu.memory_space<vmem>>, vector<1x32xf32>
    %176 = vector.broadcast %175 : vector<1x32xf32> to vector<8x32xf32>
    %177 = arith.addf %174, %176 : vector<8x32xf32>
    %178 = vector.shape_cast %177 : vector<8x32xf32> to vector<1x8x32xf32>
    %c0_94 = arith.constant 0 : index
    %c0_95 = arith.constant 0 : index
    %c0_96 = arith.constant 0 : index
    %179 = vector.load %arg23[%c0_94, %c0_95, %c0_96] : memref<1x8x32xf32, #tpu.memory_space<vmem>>, vector<1x8x32xf32>
    tpu.vector_store %arg23[%c0_94, %c0_95, %c0_96], %178 {strides = array<i32>} : memref<1x8x32xf32, #tpu.memory_space<vmem>>, vector<1x8x32xf32>,
    %c0_97 = arith.constant 0 : index
    %c0_98 = arith.constant 0 : index
    %180 = vector.load %arg21[%c0_97, %c0_98] : memref<1x32xf32, #tpu.memory_space<vmem>>, vector<1x32xf32>
    %181 = vector.shape_cast %180 : vector<1x32xf32> to vector<1x1x32xf32>
    %182 = vector.broadcast %181 : vector<1x1x32xf32> to vector<1x8x32xf32>
    %183 = arith.mulf %178, %182 : vector<1x8x32xf32>
    %cst_99 = arith.constant dense<0.000000e+00> : vector<1x8xf32>
    %184 = vector.multi_reduction <add>, %183, %cst_99 [2] : vector<1x8x32xf32> to vector<1x8xf32>
    %c0_100 = arith.constant 0 : index
    %c0_101 = arith.constant 0 : index
    %185 = vector.load %arg22[%c0_100, %c0_101] : memref<1x1xf32, #tpu.memory_space<vmem>>, vector<1x1xf32>
    %186 = vector.broadcast %185 : vector<1x1xf32> to vector<1x8xf32>
    %187 = arith.addf %184, %186 : vector<1x8xf32>
    %188 = arith.negf %187 : vector<1x8xf32>
    %189 = math.exp %188 : vector<1x8xf32>
    %cst_102 = arith.constant 1.000000e+00 : f32
    %190 = vector.broadcast %cst_102 : f32 to vector<1x8xf32>
    %191 = arith.addf %190, %189 : vector<1x8xf32>
    %192 = arith.divf %190, %191 : vector<1x8xf32>
    %193 = vector.shape_cast %187 : vector<1x8xf32> to vector<1x1x8xf32>
    %194 = vector.shape_cast %192 : vector<1x8xf32> to vector<1x1x8xf32>
    %195 = tpu.concatenate %193, %194 in 1 : vector<1x1x8xf32>, vector<1x1x8xf32> -> vector<1x2x8xf32>
    %c0_103 = arith.constant 0 : index
    %c0_104 = arith.constant 0 : index
    %c0_105 = arith.constant 0 : index
    %196 = vector.load %arg25[%c0_103, %c0_104, %c0_105] : memref<1x2x8xf32, #tpu.memory_space<vmem>>, vector<1x2x8xf32>
    tpu.vector_store %arg25[%c0_103, %c0_104, %c0_105], %195 {strides = array<i32>} : memref<1x2x8xf32, #tpu.memory_space<vmem>>, vector<1x2x8xf32>,
    return
  }
  func.func @transform_0(%arg0: i32, %arg1: i32) -> (i32, i32, i32) {
    %c0_i32 = arith.constant 0 : i32
    %c0_i32_0 = arith.constant 0 : i32
    return %arg0, %arg1, %c0_i32 : i32, i32, i32
  }
  func.func @transform_1(%arg0: i32, %arg1: i32) -> (i32, i32, i32) {
    %c0_i32 = arith.constant 0 : i32
    %c0_i32_0 = arith.constant 0 : i32
    %c0_i32_1 = arith.constant 0 : i32
    return %arg0, %c0_i32, %c0_i32_0 : i32, i32, i32
  }
  func.func @transform_2(%arg0: i32, %arg1: i32) -> (i32, i32, i32) {
    %c0_i32 = arith.constant 0 : i32
    %c0_i32_0 = arith.constant 0 : i32
    %c0_i32_1 = arith.constant 0 : i32
    return %arg0, %c0_i32, %c0_i32_0 : i32, i32, i32
  }
  func.func @transform_3(%arg0: i32, %arg1: i32) -> (i32, i32) {
    %c0_i32 = arith.constant 0 : i32
    %c0_i32_0 = arith.constant 0 : i32
    %c0_i32_1 = arith.constant 0 : i32
    return %c0_i32, %c0_i32_0 : i32, i32
  }
  func.func @transform_4(%arg0: i32, %arg1: i32) -> (i32, i32) {
    %c0_i32 = arith.constant 0 : i32
    %c0_i32_0 = arith.constant 0 : i32
    %c0_i32_1 = arith.constant 0 : i32
    return %c0_i32, %c0_i32_0 : i32, i32
  }
  func.func @transform_5(%arg0: i32, %arg1: i32) -> (i32, i32) {
    %c0_i32 = arith.constant 0 : i32
    %c0_i32_0 = arith.constant 0 : i32
    %c0_i32_1 = arith.constant 0 : i32
    return %c0_i32, %c0_i32_0 : i32, i32
  }
  func.func @transform_6(%arg0: i32, %arg1: i32) -> (i32, i32) {
    %c0_i32 = arith.constant 0 : i32
    %c0_i32_0 = arith.constant 0 : i32
    %c0_i32_1 = arith.constant 0 : i32
    return %c0_i32, %c0_i32_0 : i32, i32
  }
  func.func @transform_7(%arg0: i32, %arg1: i32) -> (i32, i32) {
    %c0_i32 = arith.constant 0 : i32
    %c0_i32_0 = arith.constant 0 : i32
    %c0_i32_1 = arith.constant 0 : i32
    return %c0_i32, %c0_i32_0 : i32, i32
  }
  func.func @transform_8(%arg0: i32, %arg1: i32) -> (i32, i32) {
    %c0_i32 = arith.constant 0 : i32
    %c0_i32_0 = arith.constant 0 : i32
    %c0_i32_1 = arith.constant 0 : i32
    return %c0_i32, %c0_i32_0 : i32, i32
  }
  func.func @transform_9(%arg0: i32, %arg1: i32) -> (i32, i32) {
    %c0_i32 = arith.constant 0 : i32
    %c0_i32_0 = arith.constant 0 : i32
    %c0_i32_1 = arith.constant 0 : i32
    return %c0_i32, %c0_i32_0 : i32, i32
  }
  func.func @transform_10(%arg0: i32, %arg1: i32) -> (i32, i32) {
    %c0_i32 = arith.constant 0 : i32
    %c0_i32_0 = arith.constant 0 : i32
    %c0_i32_1 = arith.constant 0 : i32
    return %c0_i32, %c0_i32_0 : i32, i32
  }
  func.func @transform_11(%arg0: i32, %arg1: i32) -> (i32, i32) {
    %c0_i32 = arith.constant 0 : i32
    %c0_i32_0 = arith.constant 0 : i32
    %c0_i32_1 = arith.constant 0 : i32
    return %c0_i32, %c0_i32_0 : i32, i32
  }
  func.func @transform_12(%arg0: i32, %arg1: i32) -> (i32, i32) {
    %c0_i32 = arith.constant 0 : i32
    %c0_i32_0 = arith.constant 0 : i32
    %c0_i32_1 = arith.constant 0 : i32
    return %c0_i32, %c0_i32_0 : i32, i32
  }
  func.func @transform_13(%arg0: i32, %arg1: i32) -> (i32, i32) {
    %c0_i32 = arith.constant 0 : i32
    %c0_i32_0 = arith.constant 0 : i32
    %c0_i32_1 = arith.constant 0 : i32
    return %c0_i32, %c0_i32_0 : i32, i32
  }
  func.func @transform_14(%arg0: i32, %arg1: i32) -> (i32, i32) {
    %c0_i32 = arith.constant 0 : i32
    %c0_i32_0 = arith.constant 0 : i32
    %c0_i32_1 = arith.constant 0 : i32
    return %c0_i32, %c0_i32_0 : i32, i32
  }
  func.func @transform_15(%arg0: i32, %arg1: i32) -> (i32, i32) {
    %c0_i32 = arith.constant 0 : i32
    %c0_i32_0 = arith.constant 0 : i32
    %c0_i32_1 = arith.constant 0 : i32
    return %c0_i32, %c0_i32_0 : i32, i32
  }
  func.func @transform_16(%arg0: i32, %arg1: i32) -> (i32, i32) {
    %c0_i32 = arith.constant 0 : i32
    %c0_i32_0 = arith.constant 0 : i32
    %c0_i32_1 = arith.constant 0 : i32
    return %c0_i32, %c0_i32_0 : i32, i32
  }
  func.func @transform_17(%arg0: i32, %arg1: i32) -> (i32, i32) {
    %c0_i32 = arith.constant 0 : i32
    %c0_i32_0 = arith.constant 0 : i32
    %c0_i32_1 = arith.constant 0 : i32
    return %c0_i32, %c0_i32_0 : i32, i32
  }
  func.func @transform_18(%arg0: i32, %arg1: i32) -> (i32, i32) {
    %c0_i32 = arith.constant 0 : i32
    %c0_i32_0 = arith.constant 0 : i32
    %c0_i32_1 = arith.constant 0 : i32
    return %c0_i32, %c0_i32_0 : i32, i32
  }
  func.func @transform_19(%arg0: i32, %arg1: i32) -> (i32, i32) {
    %c0_i32 = arith.constant 0 : i32
    %c0_i32_0 = arith.constant 0 : i32
    %c0_i32_1 = arith.constant 0 : i32
    return %c0_i32, %c0_i32_0 : i32, i32
  }
  func.func @transform_20(%arg0: i32, %arg1: i32) -> (i32, i32) {
    %c0_i32 = arith.constant 0 : i32
    %c0_i32_0 = arith.constant 0 : i32
    %c0_i32_1 = arith.constant 0 : i32
    return %c0_i32, %c0_i32_0 : i32, i32
  }
  func.func @transform_21(%arg0: i32, %arg1: i32) -> (i32, i32, i32) {
    %c0_i32 = arith.constant 0 : i32
    %c0_i32_0 = arith.constant 0 : i32
    return %arg0, %arg1, %c0_i32 : i32, i32, i32
  }
  func.func @transform_22(%arg0: i32, %arg1: i32) -> (i32, i32, i32, i32) {
    %c0_i32 = arith.constant 0 : i32
    %c0_i32_0 = arith.constant 0 : i32
    %c0_i32_1 = arith.constant 0 : i32
    return %arg0, %c0_i32, %arg1, %c0_i32_0 : i32, i32, i32, i32
  }
  func.func @transform_23(%arg0: i32, %arg1: i32) -> (i32, i32, i32) {
    %c0_i32 = arith.constant 0 : i32
    %c0_i32_0 = arith.constant 0 : i32
    return %arg0, %c0_i32, %arg1 : i32, i32, i32
  }
}

</mosaic_0001>

<llo_original>
// kernel: tpu_custom_call.1
$region0: #{tpu_custom_call.1}
  #allocation0 [shape = 'u32[]', space=smem, size = 0x4, offset = 0x4, fixed_abs, tag = 'smem constant byte address 0x4 - core index']
  #allocation1 [shape = 'u32[72,128]{1,0:T(1,128)}', space=vmem, size = 0x9000, scoped, tag = 'internal scratch']
  #allocation2 [shape = 'bf16[1,8,32]{2,1,0:T(8,128)(2,1)}', space=vmem, size = 0x800, scoped, tag = 'scratch operand']
  #allocation3 [shape = 'bf16[1,8,32]{2,1,0:T(8,128)(2,1)}', space=vmem, size = 0x800, scoped, tag = 'scratch operand']
  #allocation4 [shape = 'f32[1,1]{1,0:T(1,128)S(1)}', space=vmem, size = 0x200, scoped, tag = 'scoped memory for tpu_custom_call.1']
  %s0 = inlined_call_operand.vmem [shape: f32[2,8,32], index: 0, kind: input, shape index: {}]
  %s1 = inlined_call_operand.hbm [shape: bf16[2,8,32], index: 1, kind: input, shape index: {}]
  %s2 = inlined_call_operand.hbm [shape: f32[2,1,8], index: 2, kind: input, shape index: {}]
  %s3 = inlined_call_operand.vmem [shape: bf16[32,32], index: 3, kind: input, shape index: {}]
  %s4 = inlined_call_operand.hbm [shape: f32[1,32], index: 4, kind: input, shape index: {}]
  %s5 = inlined_call_operand.vmem [shape: bf16[32,32], index: 5, kind: input, shape index: {}]
  %s6 = inlined_call_operand.hbm [shape: f32[1,32], index: 6, kind: input, shape index: {}]
  %s7 = inlined_call_operand.hbm [shape: bf16[32,32], index: 7, kind: input, shape index: {}]
  %s8 = inlined_call_operand.hbm [shape: f32[1,32], index: 8, kind: input, shape index: {}]
  %s9 = inlined_call_operand.hbm [shape: bf16[32,32], index: 9, kind: input, shape index: {}]
  %s10 = inlined_call_operand.hbm [shape: f32[1,32], index: 10, kind: input, shape index: {}]
  %s11 = inlined_call_operand.hbm [shape: f32[1,32], index: 11, kind: input, shape index: {}]
  %s12 = inlined_call_operand.hbm [shape: f32[1,32], index: 12, kind: input, shape index: {}]
  %s13 = inlined_call_operand.hbm [shape: bf16[32,64], index: 13, kind: input, shape index: {}]
  %s14 = inlined_call_operand.hbm [shape: f32[1,64], index: 14, kind: input, shape index: {}]
  %s15 = inlined_call_operand.vmem [shape: bf16[64,32], index: 15, kind: input, shape index: {}]
  %s16 = inlined_call_operand.vmem [shape: f32[1,32], index: 16, kind: input, shape index: {}]
  %s17 = inlined_call_operand.vmem [shape: f32[1,32], index: 17, kind: input, shape index: {}]
  %s18 = inlined_call_operand.vmem [shape: f32[1,32], index: 18, kind: input, shape index: {}]
  %s19 = inlined_call_operand.vmem [shape: f32[1,32], index: 19, kind: input, shape index: {}]
  %s20 = inlined_call_operand.<no memory space> [shape: f32[1,1], index: 20, kind: input, shape index: {}]
  %s21 = inlined_call_operand.hbm [shape: f32[2,8,32], index: 21, kind: output, shape index: {0}]
  %s22 = inlined_call_operand.hbm [shape: bf16[2,4,8,8], index: 22, kind: output, shape index: {1}]
  %s23 = inlined_call_operand.hbm [shape: f32[2,2,8], index: 23, kind: output, shape index: {2}]
  %24 = xla_tuple %s21, %s22, %s23
  %s25 = sld [smem:[#allocation0]]
  $region185: #{tpu_custom_call.1} parent=0
    _
  %s27 = ssub.s32 1, %s25
  %s28 = scalar_select 0, %s27, %s25
  %v29 = vstv %s20
  %30 = vst [vmem:[#allocation4] sm:$0x1] %v29
  $region1: #{tpu_custom_call.1} parent=0
    #allocation5 [shape = 'u8[4096]{0}', space=vmem, size = 0x1000, scoped, tag = 'input window, operand 1']
    #allocation6 [shape = 's32[2]{0}', space=sflag, size = 0x8, scoped, tag = 'scoped memory for tpu_custom_call.1']
    #allocation7 [shape = 's32[2]{0}', space=sflag, size = 0x8, scoped, tag = 'scoped memory for tpu_custom_call.1']
    #allocation8 [shape = 'u8[1024]{0}', space=vmem, size = 0x400, scoped, tag = 'input window, operand 2']
    #allocation9 [shape = 's32[2]{0}', space=sflag, size = 0x8, scoped, tag = 'scoped memory for tpu_custom_call.1']
    #allocation10 [shape = 'u8[512]{0}', space=vmem, size = 0x400, scoped, tag = 'input window, operand 4, single buffered']
    #allocation11 [shape = 'u8[512]{0}', space=vmem, size = 0x400, scoped, tag = 'input window, operand 6, single buffered']
    #allocation12 [shape = 's32[1]{0}', space=sflag, size = 0x4, scoped, tag = 'scoped memory for tpu_custom_call.1']
    #allocation13 [shape = 'u8[8192]{0}', space=vmem, size = 0x2000, scoped, tag = 'input window, operand 7, single buffered']
    #allocation14 [shape = 'u8[512]{0}', space=vmem, size = 0x400, scoped, tag = 'input window, operand 8, single buffered']
    #allocation15 [shape = 's32[1]{0}', space=sflag, size = 0x4, scoped, tag = 'scoped memory for tpu_custom_call.1']
    #allocation16 [shape = 'u8[8192]{0}', space=vmem, size = 0x2000, scoped, tag = 'input window, operand 9, single buffered']
    #allocation17 [shape = 'u8[512]{0}', space=vmem, size = 0x400, scoped, tag = 'input window, operand 10, single buffered']
    #allocation18 [shape = 's32[1]{0}', space=sflag, size = 0x4, scoped, tag = 'scoped memory for tpu_custom_call.1']
    #allocation19 [shape = 'u8[512]{0}', space=vmem, size = 0x400, scoped, tag = 'input window, operand 11, single buffered']
    #allocation20 [shape = 'u8[512]{0}', space=vmem, size = 0x400, scoped, tag = 'input window, operand 12, single buffered']
    #allocation21 [shape = 's32[1]{0}', space=sflag, size = 0x4, scoped, tag = 'scoped memory for tpu_custom_call.1']
    #allocation22 [shape = 'u8[8192]{0}', space=vmem, size = 0x2000, scoped, tag = 'input window, operand 13, single buffered']
    #allocation23 [shape = 'u8[512]{0}', space=vmem, size = 0x400, scoped, tag = 'input window, operand 14, single buffered']
    #allocation24 [shape = 's32[1]{0}', space=sflag, size = 0x4, scoped, tag = 'scoped memory for tpu_custom_call.1']
    #allocation25 [shape = 'u8[8192]{0}', space=vmem, size = 0x2000, scoped, tag = 'output window, operand 0']
    #allocation26 [shape = 'u8[16384]{0}', space=vmem, size = 0x4000, scoped, tag = 'output window, operand 1']
    #allocation27 [shape = 's32[2]{0}', space=sflag, size = 0x8, scoped, tag = 'scoped memory for tpu_custom_call.1']
    #allocation28 [shape = 'u8[2048]{0}', space=vmem, size = 0x800, scoped, tag = 'output window, operand 2']
    %31 = vsyncpa [#allocation6], 0
    %s32 = scalar_lea.sflag [#allocation6], 1
    %33 = vsyncpa %s32, 0
    %34 = vsyncpa [#allocation9], 0
    %s35 = scalar_lea.sflag [#allocation9], 1
    %36 = vsyncpa %s35, 0
    %37 = vsyncpa [#allocation12], 0
    %38 = vsyncpa [#allocation15], 0
    %39 = vsyncpa [#allocation18], 0
    %40 = vsyncpa [#allocation21], 0
    %41 = vsyncpa [#allocation24], 0
    %42 = vsyncpa [#allocation7], 0
    %s43 = scalar_lea.sflag [#allocation7], 1
    %44 = vsyncpa %s43, 0
    %45 = vsyncpa [#allocation27], 0
    %s46 = scalar_lea.sflag [#allocation27], 1
    %47 = vsyncpa %s46, 0
    loop: start=0, step=1, limit=4
    $region2: #{tpu_custom_call.1} parent=1 // loop_pre_header
      _
    $region3: #{tpu_custom_call.1} parent=1 // loop_header
      %s49 = sphi 0, %s53
      %p50 = scmp.ge.s32.totalorder %s49, 4
      %s56 = sphi 0, %s68
      %s57 = sphi 0, %s64
      %s58 = sphi 0, %s56
      %s59 = sphi 0, %s57
      %s60 = sphi 0, %s58
      %s61 = sphi 0, %s59
      %s73 = sphi 0, %s75
      %s76 = sphi 0, %s73
      %s77 = sphi 0, %s76
      %s93 = sphi 0, %s77
      %s99 = sphi 0, %s101
      %s102 = sphi 0, %s99
      %s103 = sphi 0, %s102
      %s119 = sphi 0, %s103
      %s125 = sphi 0, %s127
      %s128 = sphi 0, %s125
      %s129 = sphi 0, %s128
      %s145 = sphi 0, %s129
      %s149 = sphi 0, %s149
      %s151 = sphi 0, %s149
      %s152 = sphi 0, %s151
      %s166 = sphi 0, %s152
      %s170 = sphi 0, %s170
      %s172 = sphi 0, %s170
      %s173 = sphi 0, %s172
      %s187 = sphi 0, %s173
      %s191 = sphi 0, %s191
      %s193 = sphi 0, %s191
      %s194 = sphi 0, %s193
      %s208 = sphi 0, %s194
      %s212 = sphi 0, %s212
      %s214 = sphi 0, %s212
      %s215 = sphi 0, %s214
      %s229 = sphi 0, %s215
      %s233 = sphi 0, %s233
      %s235 = sphi 0, %s233
      %s236 = sphi 0, %s235
      %s250 = sphi 0, %s236
      %s254 = sphi 0, %s254
      %s256 = sphi 0, %s254
      %s257 = sphi 0, %s256
      %s271 = sphi 0, %s257
      %s275 = sphi 0, %s275
      %s277 = sphi 0, %s275
      %s278 = sphi 0, %s277
      %s292 = sphi 0, %s278
      %s296 = sphi 0, %s296
      %s298 = sphi 0, %s296
      %s299 = sphi 0, %s298
      %s313 = sphi 0, %s299
      %s317 = sphi 0, %s317
      %s319 = sphi 0, %s317
      %s320 = sphi 0, %s319
      %s334 = sphi 0, %s320
      %s338 = sphi 0, %s338
      %s340 = sphi 0, %s338
      %s341 = sphi 0, %s340
      %s355 = sphi 0, %s341
      %s359 = sphi 0, %s359
      %s361 = sphi 0, %s359
      %s362 = sphi 0, %s361
      %s376 = sphi 0, %s362
      %s380 = sphi 0, %s380
      %s382 = sphi 0, %s380
      %s383 = sphi 0, %s382
      %s397 = sphi 0, %s383
      %s401 = sphi 0, %s401
      %s403 = sphi 0, %s401
      %s404 = sphi 0, %s403
      %s418 = sphi 0, %s404
      %s422 = sphi 0, %s422
      %s424 = sphi 0, %s422
      %s425 = sphi 0, %s424
      %s439 = sphi 0, %s425
      %s443 = sphi 0, %s443
      %s445 = sphi 0, %s443
      %s446 = sphi 0, %s445
      %s460 = sphi 0, %s446
      %s464 = sphi 0, %s464
      %s466 = sphi 0, %s464
      %s467 = sphi 0, %s466
      %s481 = sphi 0, %s467
      %s485 = sphi 0, %s485
      %s487 = sphi 0, %s485
      %s488 = sphi 0, %s487
      %s502 = sphi 0, %s488
      %s506 = sphi 0, %s506
      %s508 = sphi 0, %s506
      %s509 = sphi 0, %s508
      %s523 = sphi 0, %s509
      %s531 = sphi 0, %s533
      %s534 = sphi 0, %s531
      %s535 = sphi 0, %s534
      %s551 = sphi 0, %s535
      %s559 = sphi 0, %s561
      %s562 = sphi 0, %s559
      %s563 = sphi 0, %s562
      %s579 = sphi 0, %s563
      %s587 = sphi 0, %s589
      %s590 = sphi 0, %s587
      %s591 = sphi 0, %s590
      %s607 = sphi 0, %s591
    $region4: #{tpu_custom_call.1} parent=1 // loop_header_branch
      %52 = sbr.rel (%p50) target = $region8
    $region5: #{tpu_custom_call.1} parent=1 // loop_body
      %s54 = ssub.s32 %s49, 1
      %s55 = ssub.s32 %s49, 2
      %s62 = sadd.s32 1, %s57
      %p63 = scmp.ge.s32.totalorder %s62, 1
      %s64 = scalar_select %p63, 0, %s62
      %s65 = sadd.s32 1, %s56
      %s66 = scalar_select %p63, %s65, %s56
      %p67 = scmp.ge.s32.totalorder %s66, 2
      %s68 = scalar_select %p67, 0, %s66
      %s69 = ssub.s32 %s56, %s68
      %s70 = ssub.s32 %s57, %s64
      %s71 = sor.u32 %s69, %s70
      %p72 = scmp.eq.s32.totalorder %s71, 0
      %s74 = sadd.s32 %s73, 1
      %s75 = scalar_select %p72, %s73, %s74
      %p78 = pneg %p72
      %p79 = scmp.eq.s32.totalorder %s49, 1
      %p80 = por %p78, %p79
      %p81 = scmp.ne.s32.totalorder %s73, %s76
      %p82 = scmp.eq.s32.totalorder %s49, 0
      %p83 = por %p81, %p82
      %p84 = scmp.ne.s32.totalorder %s73, %s76
      %p85 = scmp.eq.s32.totalorder %s54, 1
      %p86 = por %p84, %p85
      %p87 = scmp.ne.s32.totalorder %s76, %s77
      %p88 = scmp.eq.s32.totalorder %s54, 0
      %p89 = por %p87, %p88
      %p90 = scmp.ne.s32.totalorder %s76, %s77
      %p91 = scmp.eq.s32.totalorder %s55, 1
      %p92 = por %p90, %p91
      %p94 = scmp.ne.s32.totalorder %s77, %s93
      %p95 = scmp.eq.s32.totalorder %s55, 0
      %p96 = por %p94, %p95
      %s97 = ssub.s32 %s56, %s68
      %p98 = scmp.eq.s32.totalorder %s97, 0
      %s100 = sadd.s32 %s99, 1
      %s101 = scalar_select %p98, %s99, %s100
      %p104 = pneg %p98
      %p105 = scmp.eq.s32.totalorder %s49, 1
      %p106 = por %p104, %p105
      %p107 = scmp.ne.s32.totalorder %s99, %s102
      %p108 = scmp.eq.s32.totalorder %s49, 0
      %p109 = por %p107, %p108
      %p110 = scmp.ne.s32.totalorder %s99, %s102
      %p111 = scmp.eq.s32.totalorder %s54, 1
      %p112 = por %p110, %p111
      %p113 = scmp.ne.s32.totalorder %s102, %s103
      %p114 = scmp.eq.s32.totalorder %s54, 0
      %p115 = por %p113, %p114
      %p116 = scmp.ne.s32.totalorder %s102, %s103
      %p117 = scmp.eq.s32.totalorder %s55, 1
      %p118 = por %p116, %p117
      %p120 = scmp.ne.s32.totalorder %s103, %s119
      %p121 = scmp.eq.s32.totalorder %s55, 0
      %p122 = por %p120, %p121
      %s123 = ssub.s32 %s56, %s68
      %p124 = scmp.eq.s32.totalorder %s123, 0
      %s126 = sadd.s32 %s125, 1
      %s127 = scalar_select %p124, %s125, %s126
      %p130 = pneg %p124
      %p131 = scmp.eq.s32.totalorder %s49, 1
      %p132 = por %p130, %p131
      %p133 = scmp.ne.s32.totalorder %s125, %s128
      %p134 = scmp.eq.s32.totalorder %s49, 0
      %p135 = por %p133, %p134
      %p136 = scmp.ne.s32.totalorder %s125, %s128
      %p137 = scmp.eq.s32.totalorder %s54, 1
      %p138 = por %p136, %p137
      %p139 = scmp.ne.s32.totalorder %s128, %s129
      %p140 = scmp.eq.s32.totalorder %s54, 0
      %p141 = por %p139, %p140
      %p142 = scmp.ne.s32.totalorder %s128, %s129
      %p143 = scmp.eq.s32.totalorder %s55, 1
      %p144 = por %p142, %p143
      %p146 = scmp.ne.s32.totalorder %s129, %s145
      %p147 = scmp.eq.s32.totalorder %s55, 0
      %p148 = por %p146, %p147
      %s150 = sadd.s32 %s149, 1
      %p153 = scmp.eq.s32.totalorder %s49, 1
      %p154 = scmp.ne.s32.totalorder %s149, %s151
      %p155 = scmp.eq.s32.totalorder %s49, 0
      %p156 = por %p154, %p155
      %p157 = scmp.ne.s32.totalorder %s149, %s151
      %p158 = scmp.eq.s32.totalorder %s54, 1
      %p159 = por %p157, %p158
      %p160 = scmp.ne.s32.totalorder %s151, %s152
      %p161 = scmp.eq.s32.totalorder %s54, 0
      %p162 = por %p160, %p161
      %p163 = scmp.ne.s32.totalorder %s151, %s152
      %p164 = scmp.eq.s32.totalorder %s55, 1
      %p165 = por %p163, %p164
      %p167 = scmp.ne.s32.totalorder %s152, %s166
      %p168 = scmp.eq.s32.totalorder %s55, 0
      %p169 = por %p167, %p168
      %s171 = sadd.s32 %s170, 1
      %p174 = scmp.eq.s32.totalorder %s49, 1
      %p175 = scmp.ne.s32.totalorder %s170, %s172
      %p176 = scmp.eq.s32.totalorder %s49, 0
      %p177 = por %p175, %p176
      %p178 = scmp.ne.s32.totalorder %s170, %s172
      %p179 = scmp.eq.s32.totalorder %s54, 1
      %p180 = por %p178, %p179
      %p181 = scmp.ne.s32.totalorder %s172, %s173
      %p182 = scmp.eq.s32.totalorder %s54, 0
      %p183 = por %p181, %p182
      %p184 = scmp.ne.s32.totalorder %s172, %s173
      %p185 = scmp.eq.s32.totalorder %s55, 1
      %p186 = por %p184, %p185
      %p188 = scmp.ne.s32.totalorder %s173, %s187
      %p189 = scmp.eq.s32.totalorder %s55, 0
      %p190 = por %p188, %p189
      %s192 = sadd.s32 %s191, 1
      %p195 = scmp.eq.s32.totalorder %s49, 1
      %p196 = scmp.ne.s32.totalorder %s191, %s193
      %p197 = scmp.eq.s32.totalorder %s49, 0
      %p198 = por %p196, %p197
      %p199 = scmp.ne.s32.totalorder %s191, %s193
      %p200 = scmp.eq.s32.totalorder %s54, 1
      %p201 = por %p199, %p200
      %p202 = scmp.ne.s32.totalorder %s193, %s194
      %p203 = scmp.eq.s32.totalorder %s54, 0
      %p204 = por %p202, %p203
      %p205 = scmp.ne.s32.totalorder %s193, %s194
      %p206 = scmp.eq.s32.totalorder %s55, 1
      %p207 = por %p205, %p206
      %p209 = scmp.ne.s32.totalorder %s194, %s208
      %p210 = scmp.eq.s32.totalorder %s55, 0
      %p211 = por %p209, %p210
      %s213 = sadd.s32 %s212, 1
      %p216 = scmp.eq.s32.totalorder %s49, 1
      %p217 = scmp.ne.s32.totalorder %s212, %s214
      %p218 = scmp.eq.s32.totalorder %s49, 0
      %p219 = por %p217, %p218
      %p220 = scmp.ne.s32.totalorder %s212, %s214
      %p221 = scmp.eq.s32.totalorder %s54, 1
      %p222 = por %p220, %p221
      %p223 = scmp.ne.s32.totalorder %s214, %s215
      %p224 = scmp.eq.s32.totalorder %s54, 0
      %p225 = por %p223, %p224
      %p226 = scmp.ne.s32.totalorder %s214, %s215
      %p227 = scmp.eq.s32.totalorder %s55, 1
      %p228 = por %p226, %p227
      %p230 = scmp.ne.s32.totalorder %s215, %s229
      %p231 = scmp.eq.s32.totalorder %s55, 0
      %p232 = por %p230, %p231
      %s234 = sadd.s32 %s233, 1
      %p237 = scmp.eq.s32.totalorder %s49, 1
      %p238 = scmp.ne.s32.totalorder %s233, %s235
      %p239 = scmp.eq.s32.totalorder %s49, 0
      %p240 = por %p238, %p239
      %p241 = scmp.ne.s32.totalorder %s233, %s235
      %p242 = scmp.eq.s32.totalorder %s54, 1
      %p243 = por %p241, %p242
      %p244 = scmp.ne.s32.totalorder %s235, %s236
      %p245 = scmp.eq.s32.totalorder %s54, 0
      %p246 = por %p244, %p245
      %p247 = scmp.ne.s32.totalorder %s235, %s236
      %p248 = scmp.eq.s32.totalorder %s55, 1
      %p249 = por %p247, %p248
      %p251 = scmp.ne.s32.totalorder %s236, %s250
      %p252 = scmp.eq.s32.totalorder %s55, 0
      %p253 = por %p251, %p252
      %s255 = sadd.s32 %s254, 1
      %p258 = scmp.eq.s32.totalorder %s49, 1
      %p259 = scmp.ne.s32.totalorder %s254, %s256
      %p260 = scmp.eq.s32.totalorder %s49, 0
      %p261 = por %p259, %p260
      %p262 = scmp.ne.s32.totalorder %s254, %s256
      %p263 = scmp.eq.s32.totalorder %s54, 1
      %p264 = por %p262, %p263
      %p265 = scmp.ne.s32.totalorder %s256, %s257
      %p266 = scmp.eq.s32.totalorder %s54, 0
      %p267 = por %p265, %p266
      %p268 = scmp.ne.s32.totalorder %s256, %s257
      %p269 = scmp.eq.s32.totalorder %s55, 1
      %p270 = por %p268, %p269
      %p272 = scmp.ne.s32.totalorder %s257, %s271
      %p273 = scmp.eq.s32.totalorder %s55, 0
      %p274 = por %p272, %p273
      %s276 = sadd.s32 %s275, 1
      %p279 = scmp.eq.s32.totalorder %s49, 1
      %p280 = scmp.ne.s32.totalorder %s275, %s277
      %p281 = scmp.eq.s32.totalorder %s49, 0
      %p282 = por %p280, %p281
      %p283 = scmp.ne.s32.totalorder %s275, %s277
      %p284 = scmp.eq.s32.totalorder %s54, 1
      %p285 = por %p283, %p284
      %p286 = scmp.ne.s32.totalorder %s277, %s278
      %p287 = scmp.eq.s32.totalorder %s54, 0
      %p288 = por %p286, %p287
      %p289 = scmp.ne.s32.totalorder %s277, %s278
      %p290 = scmp.eq.s32.totalorder %s55, 1
      %p291 = por %p289, %p290
      %p293 = scmp.ne.s32.totalorder %s278, %s292
      %p294 = scmp.eq.s32.totalorder %s55, 0
      %p295 = por %p293, %p294
      %s297 = sadd.s32 %s296, 1
      %p300 = scmp.eq.s32.totalorder %s49, 1
      %p301 = scmp.ne.s32.totalorder %s296, %s298
      %p302 = scmp.eq.s32.totalorder %s49, 0
      %p303 = por %p301, %p302
      %p304 = scmp.ne.s32.totalorder %s296, %s298
      %p305 = scmp.eq.s32.totalorder %s54, 1
      %p306 = por %p304, %p305
      %p307 = scmp.ne.s32.totalorder %s298, %s299
      %p308 = scmp.eq.s32.totalorder %s54, 0
      %p309 = por %p307, %p308
      %p310 = scmp.ne.s32.totalorder %s298, %s299
      %p311 = scmp.eq.s32.totalorder %s55, 1
      %p312 = por %p310, %p311
      %p314 = scmp.ne.s32.totalorder %s299, %s313
      %p315 = scmp.eq.s32.totalorder %s55, 0
      %p316 = por %p314, %p315
      %s318 = sadd.s32 %s317, 1
      %p321 = scmp.eq.s32.totalorder %s49, 1
      %p322 = scmp.ne.s32.totalorder %s317, %s319
      %p323 = scmp.eq.s32.totalorder %s49, 0
      %p324 = por %p322, %p323
      %p325 = scmp.ne.s32.totalorder %s317, %s319
      %p326 = scmp.eq.s32.totalorder %s54, 1
      %p327 = por %p325, %p326
      %p328 = scmp.ne.s32.totalorder %s319, %s320
      %p329 = scmp.eq.s32.totalorder %s54, 0
      %p330 = por %p328, %p329
      %p331 = scmp.ne.s32.totalorder %s319, %s320
      %p332 = scmp.eq.s32.totalorder %s55, 1
      %p333 = por %p331, %p332
      %p335 = scmp.ne.s32.totalorder %s320, %s334
      %p336 = scmp.eq.s32.totalorder %s55, 0
      %p337 = por %p335, %p336
      %s339 = sadd.s32 %s338, 1
      %p342 = scmp.eq.s32.totalorder %s49, 1
      %p343 = scmp.ne.s32.totalorder %s338, %s340
      %p344 = scmp.eq.s32.totalorder %s49, 0
      %p345 = por %p343, %p344
      %p346 = scmp.ne.s32.totalorder %s338, %s340
      %p347 = scmp.eq.s32.totalorder %s54, 1
      %p348 = por %p346, %p347
      %p349 = scmp.ne.s32.totalorder %s340, %s341
      %p350 = scmp.eq.s32.totalorder %s54, 0
      %p351 = por %p349, %p350
      %p352 = scmp.ne.s32.totalorder %s340, %s341
      %p353 = scmp.eq.s32.totalorder %s55, 1
      %p354 = por %p352, %p353
      %p356 = scmp.ne.s32.totalorder %s341, %s355
      %p357 = scmp.eq.s32.totalorder %s55, 0
      %p358 = por %p356, %p357
      %s360 = sadd.s32 %s359, 1
      %p363 = scmp.eq.s32.totalorder %s49, 1
      %p364 = scmp.ne.s32.totalorder %s359, %s361
      %p365 = scmp.eq.s32.totalorder %s49, 0
      %p366 = por %p364, %p365
      %p367 = scmp.ne.s32.totalorder %s359, %s361
      %p368 = scmp.eq.s32.totalorder %s54, 1
      %p369 = por %p367, %p368
      %p370 = scmp.ne.s32.totalorder %s361, %s362
      %p371 = scmp.eq.s32.totalorder %s54, 0
      %p372 = por %p370, %p371
      %p373 = scmp.ne.s32.totalorder %s361, %s362
      %p374 = scmp.eq.s32.totalorder %s55, 1
      %p375 = por %p373, %p374
      %p377 = scmp.ne.s32.totalorder %s362, %s376
      %p378 = scmp.eq.s32.totalorder %s55, 0
      %p379 = por %p377, %p378
      %s381 = sadd.s32 %s380, 1
      %p384 = scmp.eq.s32.totalorder %s49, 1
      %p385 = scmp.ne.s32.totalorder %s380, %s382
      %p386 = scmp.eq.s32.totalorder %s49, 0
      %p387 = por %p385, %p386
      %p388 = scmp.ne.s32.totalorder %s380, %s382
      %p389 = scmp.eq.s32.totalorder %s54, 1
      %p390 = por %p388, %p389
      %p391 = scmp.ne.s32.totalorder %s382, %s383
      %p392 = scmp.eq.s32.totalorder %s54, 0
      %p393 = por %p391, %p392
      %p394 = scmp.ne.s32.totalorder %s382, %s383
      %p395 = scmp.eq.s32.totalorder %s55, 1
      %p396 = por %p394, %p395
      %p398 = scmp.ne.s32.totalorder %s383, %s397
      %p399 = scmp.eq.s32.totalorder %s55, 0
      %p400 = por %p398, %p399
      %s402 = sadd.s32 %s401, 1
      %p405 = scmp.eq.s32.totalorder %s49, 1
      %p406 = scmp.ne.s32.totalorder %s401, %s403
      %p407 = scmp.eq.s32.totalorder %s49, 0
      %p408 = por %p406, %p407
      %p409 = scmp.ne.s32.totalorder %s401, %s403
      %p410 = scmp.eq.s32.totalorder %s54, 1
      %p411 = por %p409, %p410
      %p412 = scmp.ne.s32.totalorder %s403, %s404
      %p413 = scmp.eq.s32.totalorder %s54, 0
      %p414 = por %p412, %p413
      %p415 = scmp.ne.s32.totalorder %s403, %s404
      %p416 = scmp.eq.s32.totalorder %s55, 1
      %p417 = por %p415, %p416
      %p419 = scmp.ne.s32.totalorder %s404, %s418
      %p420 = scmp.eq.s32.totalorder %s55, 0
      %p421 = por %p419, %p420
      %s423 = sadd.s32 %s422, 1
      %p426 = scmp.eq.s32.totalorder %s49, 1
      %p427 = scmp.ne.s32.totalorder %s422, %s424
      %p428 = scmp.eq.s32.totalorder %s49, 0
      %p429 = por %p427, %p428
      %p430 = scmp.ne.s32.totalorder %s422, %s424
      %p431 = scmp.eq.s32.totalorder %s54, 1
      %p432 = por %p430, %p431
      %p433 = scmp.ne.s32.totalorder %s424, %s425
      %p434 = scmp.eq.s32.totalorder %s54, 0
      %p435 = por %p433, %p434
      %p436 = scmp.ne.s32.totalorder %s424, %s425
      %p437 = scmp.eq.s32.totalorder %s55, 1
      %p438 = por %p436, %p437
      %p440 = scmp.ne.s32.totalorder %s425, %s439
      %p441 = scmp.eq.s32.totalorder %s55, 0
      %p442 = por %p440, %p441
      %s444 = sadd.s32 %s443, 1
      %p447 = scmp.eq.s32.totalorder %s49, 1
      %p448 = scmp.ne.s32.totalorder %s443, %s445
      %p449 = scmp.eq.s32.totalorder %s49, 0
      %p450 = por %p448, %p449
      %p451 = scmp.ne.s32.totalorder %s443, %s445
      %p452 = scmp.eq.s32.totalorder %s54, 1
      %p453 = por %p451, %p452
      %p454 = scmp.ne.s32.totalorder %s445, %s446
      %p455 = scmp.eq.s32.totalorder %s54, 0
      %p456 = por %p454, %p455
      %p457 = scmp.ne.s32.totalorder %s445, %s446
      %p458 = scmp.eq.s32.totalorder %s55, 1
      %p459 = por %p457, %p458
      %p461 = scmp.ne.s32.totalorder %s446, %s460
      %p462 = scmp.eq.s32.totalorder %s55, 0
      %p463 = por %p461, %p462
      %s465 = sadd.s32 %s464, 1
      %p468 = scmp.eq.s32.totalorder %s49, 1
      %p469 = scmp.ne.s32.totalorder %s464, %s466
      %p470 = scmp.eq.s32.totalorder %s49, 0
      %p471 = por %p469, %p470
      %p472 = scmp.ne.s32.totalorder %s464, %s466
      %p473 = scmp.eq.s32.totalorder %s54, 1
      %p474 = por %p472, %p473
      %p475 = scmp.ne.s32.totalorder %s466, %s467
      %p476 = scmp.eq.s32.totalorder %s54, 0
      %p477 = por %p475, %p476
      %p478 = scmp.ne.s32.totalorder %s466, %s467
      %p479 = scmp.eq.s32.totalorder %s55, 1
      %p480 = por %p478, %p479
      %p482 = scmp.ne.s32.totalorder %s467, %s481
      %p483 = scmp.eq.s32.totalorder %s55, 0
      %p484 = por %p482, %p483
      %s486 = sadd.s32 %s485, 1
      %p489 = scmp.eq.s32.totalorder %s49, 1
      %p490 = scmp.ne.s32.totalorder %s485, %s487
      %p491 = scmp.eq.s32.totalorder %s49, 0
      %p492 = por %p490, %p491
      %p493 = scmp.ne.s32.totalorder %s485, %s487
      %p494 = scmp.eq.s32.totalorder %s54, 1
      %p495 = por %p493, %p494
      %p496 = scmp.ne.s32.totalorder %s487, %s488
      %p497 = scmp.eq.s32.totalorder %s54, 0
      %p498 = por %p496, %p497
      %p499 = scmp.ne.s32.totalorder %s487, %s488
      %p500 = scmp.eq.s32.totalorder %s55, 1
      %p501 = por %p499, %p500
      %p503 = scmp.ne.s32.totalorder %s488, %s502
      %p504 = scmp.eq.s32.totalorder %s55, 0
      %p505 = por %p503, %p504
      %s507 = sadd.s32 %s506, 1
      %p510 = scmp.eq.s32.totalorder %s49, 1
      %p511 = scmp.ne.s32.totalorder %s506, %s508
      %p512 = scmp.eq.s32.totalorder %s49, 0
      %p513 = por %p511, %p512
      %p514 = scmp.ne.s32.totalorder %s506, %s508
      %p515 = scmp.eq.s32.totalorder %s54, 1
      %p516 = por %p514, %p515
      %p517 = scmp.ne.s32.totalorder %s508, %s509
      %p518 = scmp.eq.s32.totalorder %s54, 0
      %p519 = por %p517, %p518
      %p520 = scmp.ne.s32.totalorder %s508, %s509
      %p521 = scmp.eq.s32.totalorder %s55, 1
      %p522 = por %p520, %p521
      %p524 = scmp.ne.s32.totalorder %s509, %s523
      %p525 = scmp.eq.s32.totalorder %s55, 0
      %p526 = por %p524, %p525
      %s527 = ssub.s32 %s56, %s68
      %s528 = ssub.s32 %s57, %s64
      %s529 = sor.u32 %s527, %s528
      %p530 = scmp.eq.s32.totalorder %s529, 0
      %s532 = sadd.s32 %s531, 1
      %s533 = scalar_select %p530, %s531, %s532
      %p536 = pneg %p530
      %p537 = scmp.eq.s32.totalorder %s49, 1
      %p538 = por %p536, %p537
      %p539 = scmp.ne.s32.totalorder %s531, %s534
      %p540 = scmp.eq.s32.totalorder %s49, 0
      %p541 = por %p539, %p540
      %p542 = scmp.ne.s32.totalorder %s531, %s534
      %p543 = scmp.eq.s32.totalorder %s54, 1
      %p544 = por %p542, %p543
      %p545 = scmp.ne.s32.totalorder %s534, %s535
      %p546 = scmp.eq.s32.totalorder %s54, 0
      %p547 = por %p545, %p546
      %p548 = scmp.ne.s32.totalorder %s534, %s535
      %p549 = scmp.eq.s32.totalorder %s55, 1
      %p550 = por %p548, %p549
      %p552 = scmp.ne.s32.totalorder %s535, %s551
      %p553 = scmp.eq.s32.totalorder %s55, 0
      %p554 = por %p552, %p553
      %s555 = ssub.s32 %s56, %s68
      %s556 = ssub.s32 %s57, %s64
      %s557 = sor.u32 %s555, %s556
      %p558 = scmp.eq.s32.totalorder %s557, 0
      %s560 = sadd.s32 %s559, 1
      %s561 = scalar_select %p558, %s559, %s560
      %p564 = pneg %p558
      %p565 = scmp.eq.s32.totalorder %s49, 1
      %p566 = por %p564, %p565
      %p567 = scmp.ne.s32.totalorder %s559, %s562
      %p568 = scmp.eq.s32.totalorder %s49, 0
      %p569 = por %p567, %p568
      %p570 = scmp.ne.s32.totalorder %s559, %s562
      %p571 = scmp.eq.s32.totalorder %s54, 1
      %p572 = por %p570, %p571
      %p573 = scmp.ne.s32.totalorder %s562, %s563
      %p574 = scmp.eq.s32.totalorder %s54, 0
      %p575 = por %p573, %p574
      %p576 = scmp.ne.s32.totalorder %s562, %s563
      %p577 = scmp.eq.s32.totalorder %s55, 1
      %p578 = por %p576, %p577
      %p580 = scmp.ne.s32.totalorder %s563, %s579
      %p581 = scmp.eq.s32.totalorder %s55, 0
      %p582 = por %p580, %p581
      %s583 = ssub.s32 %s56, %s68
      %s584 = ssub.s32 %s57, %s64
      %s585 = sor.u32 %s583, %s584
      %p586 = scmp.eq.s32.totalorder %s585, 0
      %s588 = sadd.s32 %s587, 1
      %s589 = scalar_select %p586, %s587, %s588
      %p592 = pneg %p586
      %p593 = scmp.eq.s32.totalorder %s49, 1
      %p594 = por %p592, %p593
      %p595 = scmp.ne.s32.totalorder %s587, %s590
      %p596 = scmp.eq.s32.totalorder %s49, 0
      %p597 = por %p595, %p596
      %p598 = scmp.ne.s32.totalorder %s587, %s590
      %p599 = scmp.eq.s32.totalorder %s54, 1
      %p600 = por %p598, %p599
      %p601 = scmp.ne.s32.totalorder %s590, %s591
      %p602 = scmp.eq.s32.totalorder %s54, 0
      %p603 = por %p601, %p602
      %p604 = scmp.ne.s32.totalorder %s590, %s591
      %p605 = scmp.eq.s32.totalorder %s55, 1
      %p606 = por %p604, %p605
      %p608 = scmp.ne.s32.totalorder %s591, %s607
      %p609 = scmp.eq.s32.totalorder %s55, 0
      %p610 = por %p608, %p609
      %p611 = scmp.le.s32.totalorder 1, %s49
      %p612 = scmp.lt.s32.totalorder %s49, 3
      %p613 = pnand %p611, %p612
      %p614 = pneg %p613
      // Predicated region
      $region9: #{tpu_custom_call.1} parent=5 // pred_check
        _
      $region10: #{tpu_custom_call.1} parent=5 // pred_check_branch
        %616 = sbr.rel (%p613) target = $region12
      $region11: #{tpu_custom_call.1} parent=5 // pred_region
        %s617 = ssub.s32 %s49, 1
        // Predicated region
        $region13: #{tpu_custom_call.1} parent=11 // pred_check
          %p618 = pneg %p162
        $region14: #{tpu_custom_call.1} parent=11 // pred_check_branch
          %620 = sbr.rel (%p618) target = $region16
        $region15: #{tpu_custom_call.1} parent=11 // pred_region
          _
        $region16: #{tpu_custom_call.1} parent=11 // pred_fallthru
          _
        // Predicated region
        $region17: #{tpu_custom_call.1} parent=11 // pred_check
          %p621 = pneg %p183
        $region18: #{tpu_custom_call.1} parent=11 // pred_check_branch
          %623 = sbr.rel (%p621) target = $region20
        $region19: #{tpu_custom_call.1} parent=11 // pred_region
          %625 = vsyncadd [#allocation9], 0
          %s627 = sshll.u32 %s4, 4
          %s628 = int_to_ptr.hbm [resolvable:$true] %s627
          %s629 = sshll.u32 [#allocation10], 4
          %s630 = int_to_ptr.vmem [resolvable:$true] %s629
          %632 = dma.hbm_to_vmem [thread:$0]  %s628, 16, %s630, [#allocation9]
        $region20: #{tpu_custom_call.1} parent=11 // pred_fallthru
          _
        // Predicated region
        $region21: #{tpu_custom_call.1} parent=11 // pred_check
          %p633 = pneg %p204
        $region22: #{tpu_custom_call.1} parent=11 // pred_check_branch
          %635 = sbr.rel (%p633) target = $region24
        $region23: #{tpu_custom_call.1} parent=11 // pred_region
          _
        $region24: #{tpu_custom_call.1} parent=11 // pred_fallthru
          _
        // Predicated region
        $region25: #{tpu_custom_call.1} parent=11 // pred_check
          %p636 = pneg %p225
        $region26: #{tpu_custom_call.1} parent=11 // pred_check_branch
          %638 = sbr.rel (%p636) target = $region28
        $region27: #{tpu_custom_call.1} parent=11 // pred_region
          %640 = vsyncadd [#allocation12], 0
          %s642 = sshll.u32 %s6, 4
          %s643 = int_to_ptr.hbm [resolvable:$true] %s642
          %s644 = sshll.u32 [#allocation11], 4
          %s645 = int_to_ptr.vmem [resolvable:$true] %s644
          %647 = dma.hbm_to_vmem [thread:$0]  %s643, 16, %s645, [#allocation12]
        $region28: #{tpu_custom_call.1} parent=11 // pred_fallthru
          _
        // Predicated region
        $region29: #{tpu_custom_call.1} parent=11 // pred_check
          %p648 = pneg %p246
        $region30: #{tpu_custom_call.1} parent=11 // pred_check_branch
          %650 = sbr.rel (%p648) target = $region32
        $region31: #{tpu_custom_call.1} parent=11 // pred_region
          %652 = vsyncadd [#allocation12], 0
          %s653 = sshll.u32 %s7, 4
          %s654 = int_to_ptr.hbm [resolvable:$true] %s653
          %s655 = sshll.u32 [#allocation13], 4
          %s656 = int_to_ptr.vmem [resolvable:$true] %s655
          %661 = dma.hbm_to_vmem [thread:$0]  %s654, 256, %s656, [#allocation12], 64, 64, 4
        $region32: #{tpu_custom_call.1} parent=11 // pred_fallthru
          _
        // Predicated region
        $region33: #{tpu_custom_call.1} parent=11 // pred_check
          %p662 = pneg %p267
        $region34: #{tpu_custom_call.1} parent=11 // pred_check_branch
          %664 = sbr.rel (%p662) target = $region36
        $region35: #{tpu_custom_call.1} parent=11 // pred_region
          %666 = vsyncadd [#allocation15], 0
          %s668 = sshll.u32 %s8, 4
          %s669 = int_to_ptr.hbm [resolvable:$true] %s668
          %s670 = sshll.u32 [#allocation14], 4
          %s671 = int_to_ptr.vmem [resolvable:$true] %s670
          %673 = dma.hbm_to_vmem [thread:$0]  %s669, 16, %s671, [#allocation15]
        $region36: #{tpu_custom_call.1} parent=11 // pred_fallthru
          _
        // Predicated region
        $region37: #{tpu_custom_call.1} parent=11 // pred_check
          %p674 = pneg %p288
        $region38: #{tpu_custom_call.1} parent=11 // pred_check_branch
          %676 = sbr.rel (%p674) target = $region40
        $region39: #{tpu_custom_call.1} parent=11 // pred_region
          %678 = vsyncadd [#allocation15], 0
          %s679 = sshll.u32 %s9, 4
          %s680 = int_to_ptr.hbm [resolvable:$true] %s679
          %s681 = sshll.u32 [#allocation16], 4
          %s682 = int_to_ptr.vmem [resolvable:$true] %s681
          %687 = dma.hbm_to_vmem [thread:$0]  %s680, 256, %s682, [#allocation15], 64, 64, 4
        $region40: #{tpu_custom_call.1} parent=11 // pred_fallthru
          _
        // Predicated region
        $region41: #{tpu_custom_call.1} parent=11 // pred_check
          %p688 = pneg %p309
        $region42: #{tpu_custom_call.1} parent=11 // pred_check_branch
          %690 = sbr.rel (%p688) target = $region44
        $region43: #{tpu_custom_call.1} parent=11 // pred_region
          %692 = vsyncadd [#allocation18], 0
          %s694 = sshll.u32 %s10, 4
          %s695 = int_to_ptr.hbm [resolvable:$true] %s694
          %s696 = sshll.u32 [#allocation17], 4
          %s697 = int_to_ptr.vmem [resolvable:$true] %s696
          %699 = dma.hbm_to_vmem [thread:$0]  %s695, 16, %s697, [#allocation18]
        $region44: #{tpu_custom_call.1} parent=11 // pred_fallthru
          _
        // Predicated region
        $region45: #{tpu_custom_call.1} parent=11 // pred_check
          %p700 = pneg %p330
        $region46: #{tpu_custom_call.1} parent=11 // pred_check_branch
          %702 = sbr.rel (%p700) target = $region48
        $region47: #{tpu_custom_call.1} parent=11 // pred_region
          %704 = vsyncadd [#allocation18], 0
          %s706 = sshll.u32 %s11, 4
          %s707 = int_to_ptr.hbm [resolvable:$true] %s706
          %s708 = sshll.u32 [#allocation19], 4
          %s709 = int_to_ptr.vmem [resolvable:$true] %s708
          %711 = dma.hbm_to_vmem [thread:$0]  %s707, 16, %s709, [#allocation18]
        $region48: #{tpu_custom_call.1} parent=11 // pred_fallthru
          _
        // Predicated region
        $region49: #{tpu_custom_call.1} parent=11 // pred_check
          %p712 = pneg %p351
        $region50: #{tpu_custom_call.1} parent=11 // pred_check_branch
          %714 = sbr.rel (%p712) target = $region52
        $region51: #{tpu_custom_call.1} parent=11 // pred_region
          %716 = vsyncadd [#allocation21], 0
          %s718 = sshll.u32 %s12, 4
          %s719 = int_to_ptr.hbm [resolvable:$true] %s718
          %s720 = sshll.u32 [#allocation20], 4
          %s721 = int_to_ptr.vmem [resolvable:$true] %s720
          %723 = dma.hbm_to_vmem [thread:$0]  %s719, 16, %s721, [#allocation21]
        $region52: #{tpu_custom_call.1} parent=11 // pred_fallthru
          _
        // Predicated region
        $region53: #{tpu_custom_call.1} parent=11 // pred_check
          %p724 = pneg %p372
        $region54: #{tpu_custom_call.1} parent=11 // pred_check_branch
          %726 = sbr.rel (%p724) target = $region56
        $region55: #{tpu_custom_call.1} parent=11 // pred_region
          %728 = vsyncadd [#allocation21], 0
          %s729 = sshll.u32 %s13, 4
          %s730 = int_to_ptr.hbm [resolvable:$true] %s729
          %s731 = sshll.u32 [#allocation22], 4
          %s732 = int_to_ptr.vmem [resolvable:$true] %s731
          %737 = dma.hbm_to_vmem [thread:$0]  %s730, 256, %s732, [#allocation21], 64, 64, 4
        $region56: #{tpu_custom_call.1} parent=11 // pred_fallthru
          _
        // Predicated region
        $region57: #{tpu_custom_call.1} parent=11 // pred_check
          %p738 = pneg %p393
        $region58: #{tpu_custom_call.1} parent=11 // pred_check_branch
          %740 = sbr.rel (%p738) target = $region60
        $region59: #{tpu_custom_call.1} parent=11 // pred_region
          %742 = vsyncadd [#allocation24], 0
          %s744 = sshll.u32 %s14, 4
          %s745 = int_to_ptr.hbm [resolvable:$true] %s744
          %s746 = sshll.u32 [#allocation23], 4
          %s747 = int_to_ptr.vmem [resolvable:$true] %s746
          %749 = dma.hbm_to_vmem [thread:$0]  %s745, 16, %s747, [#allocation24]
        $region60: #{tpu_custom_call.1} parent=11 // pred_fallthru
          _
        // Predicated region
        $region61: #{tpu_custom_call.1} parent=11 // pred_check
          %p750 = pneg %p414
        $region62: #{tpu_custom_call.1} parent=11 // pred_check_branch
          %752 = sbr.rel (%p750) target = $region64
        $region63: #{tpu_custom_call.1} parent=11 // pred_region
          _
        $region64: #{tpu_custom_call.1} parent=11 // pred_fallthru
          _
        // Predicated region
        $region65: #{tpu_custom_call.1} parent=11 // pred_check
          %p753 = pneg %p435
        $region66: #{tpu_custom_call.1} parent=11 // pred_check_branch
          %755 = sbr.rel (%p753) target = $region68
        $region67: #{tpu_custom_call.1} parent=11 // pred_region
          _
        $region68: #{tpu_custom_call.1} parent=11 // pred_fallthru
          _
        // Predicated region
        $region69: #{tpu_custom_call.1} parent=11 // pred_check
          %p756 = pneg %p456
        $region70: #{tpu_custom_call.1} parent=11 // pred_check_branch
          %758 = sbr.rel (%p756) target = $region72
        $region71: #{tpu_custom_call.1} parent=11 // pred_region
          _
        $region72: #{tpu_custom_call.1} parent=11 // pred_fallthru
          _
        // Predicated region
        $region73: #{tpu_custom_call.1} parent=11 // pred_check
          %p759 = pneg %p477
        $region74: #{tpu_custom_call.1} parent=11 // pred_check_branch
          %761 = sbr.rel (%p759) target = $region76
        $region75: #{tpu_custom_call.1} parent=11 // pred_region
          _
        $region76: #{tpu_custom_call.1} parent=11 // pred_fallthru
          _
        // Predicated region
        $region77: #{tpu_custom_call.1} parent=11 // pred_check
          %p762 = pneg %p498
        $region78: #{tpu_custom_call.1} parent=11 // pred_check_branch
          %764 = sbr.rel (%p762) target = $region80
        $region79: #{tpu_custom_call.1} parent=11 // pred_region
          _
        $region80: #{tpu_custom_call.1} parent=11 // pred_fallthru
          _
        // Predicated region
        $region81: #{tpu_custom_call.1} parent=11 // pred_check
          %p765 = pneg %p519
        $region82: #{tpu_custom_call.1} parent=11 // pred_check_branch
          %767 = sbr.rel (%p765) target = $region84
        $region83: #{tpu_custom_call.1} parent=11 // pred_region
          _
        $region84: #{tpu_custom_call.1} parent=11 // pred_fallthru
          _
      $region12: #{tpu_custom_call.1} parent=5 // pred_fallthru
        _
      %p768 = scmp.lt.s32.totalorder %s49, 2
      // Predicated region
      $region85: #{tpu_custom_call.1} parent=5 // pred_check
        %p769 = pneg %p768
      $region86: #{tpu_custom_call.1} parent=5 // pred_check_branch
        %771 = sbr.rel (%p769) target = $region88
      $region87: #{tpu_custom_call.1} parent=5 // pred_region
        // Predicated region
        $region89: #{tpu_custom_call.1} parent=87 // pred_check
          %p772 = pneg %p83
        $region90: #{tpu_custom_call.1} parent=87 // pred_check_branch
          %774 = sbr.rel (%p772) target = $region92
        $region91: #{tpu_custom_call.1} parent=87 // pred_region
          %p775 = scmp.lt.s32.totalorder %s56, 1
          %s776 = scalar_select %p775, %s56, 1
          %p777 = scmp.lt.s32.totalorder %s57, 0
          %s778 = scalar_select %p777, %s57, 0
          %s779 = sadd.s32 %s778, %s776
          %s780 = smul.addr %s779, 8
          %s781 = scalar_lea.vmem %s0, %s780
        $region92: #{tpu_custom_call.1} parent=87 // pred_fallthru
          _
        // Predicated region
        $region93: #{tpu_custom_call.1} parent=87 // pred_check
          %p782 = pneg %p109
        $region94: #{tpu_custom_call.1} parent=87 // pred_check_branch
          %784 = sbr.rel (%p782) target = $region96
        $region95: #{tpu_custom_call.1} parent=87 // pred_region
          %s785 = sand.u32 %s99, 1
          %s786 = scalar_lea.sflag [#allocation6], %s785
          %s787 = sand.u32 %s99, 1
          %s788 = smul.addr %s787, 4
          %s789 = scalar_lea.vmem [#allocation5], %s788
          %791 = vsyncadd %s786, 0
          %s792 = smul.addr %s56, 4
          %s793 = scalar_lea.hbm %s1, %s792
          %s795 = sshll.u32 %s793, 4
          %s796 = int_to_ptr.hbm [resolvable:$true] %s795
          %s797 = sshll.u32 %s789, 4
          %s798 = int_to_ptr.vmem [resolvable:$true] %s797
          %800 = dma.hbm_to_vmem [thread:$0]  %s796, 64, %s798, %s786
        $region96: #{tpu_custom_call.1} parent=87 // pred_fallthru
          _
        // Predicated region
        $region97: #{tpu_custom_call.1} parent=87 // pred_check
          %p801 = pneg %p135
        $region98: #{tpu_custom_call.1} parent=87 // pred_check_branch
          %803 = sbr.rel (%p801) target = $region100
        $region99: #{tpu_custom_call.1} parent=87 // pred_region
          %s804 = sand.u32 %s49, 1
          %s805 = scalar_lea.sflag [#allocation9], %s804
          %s806 = sand.u32 %s125, 1
          %s807 = scalar_lea.vmem [#allocation8], %s806
          %809 = vsyncadd %s805, 0
          %s810 = scalar_lea.hbm %s2, %s56
          %s812 = sshll.u32 %s810, 4
          %s813 = int_to_ptr.hbm [resolvable:$true] %s812
          %s814 = sshll.u32 %s807, 4
          %s815 = int_to_ptr.vmem [resolvable:$true] %s814
          %817 = dma.hbm_to_vmem [thread:$0]  %s813, 16, %s815, %s805
        $region100: #{tpu_custom_call.1} parent=87 // pred_fallthru
          _
      $region88: #{tpu_custom_call.1} parent=5 // pred_fallthru
        _
      %p818 = scmp.le.s32.totalorder 1, %s49
      %p819 = scmp.lt.s32.totalorder %s49, 3
      %p820 = pnand %p818, %p819
      %p821 = pneg %p820
      // Predicated region
      $region101: #{tpu_custom_call.1} parent=5 // pred_check
        _
      $region102: #{tpu_custom_call.1} parent=5 // pred_check_branch
        %823 = sbr.rel (%p820) target = $region104
      $region103: #{tpu_custom_call.1} parent=5 // pred_region
        %s824 = ssub.s32 %s49, 1
        %s825 = sand.u32 %s102, 1
        %s826 = scalar_lea.sflag [#allocation6], %s825
        %s827 = sand.u32 %s102, 1
        %s828 = smul.addr %s827, 4
        %s829 = scalar_lea.vmem [#allocation5], %s828
        // Predicated region
        $region105: #{tpu_custom_call.1} parent=103 // pred_check
          %p830 = pneg %p115
        $region106: #{tpu_custom_call.1} parent=103 // pred_check_branch
          %832 = sbr.rel (%p830) target = $region108
        $region107: #{tpu_custom_call.1} parent=103 // pred_region
          %834 = dma.done %s826, 64
        $region108: #{tpu_custom_call.1} parent=103 // pred_fallthru
          _
        %s835 = sand.u32 %s54, 1
        %s836 = scalar_lea.sflag [#allocation9], %s835
        %s837 = sand.u32 %s128, 1
        %s838 = scalar_lea.vmem [#allocation8], %s837
        // Predicated region
        $region109: #{tpu_custom_call.1} parent=103 // pred_check
          %p839 = pneg %p141
        $region110: #{tpu_custom_call.1} parent=103 // pred_check_branch
          %841 = sbr.rel (%p839) target = $region112
        $region111: #{tpu_custom_call.1} parent=103 // pred_region
          %843 = dma.done %s836, 16
        $region112: #{tpu_custom_call.1} parent=103 // pred_fallthru
          _
        // Predicated region
        $region113: #{tpu_custom_call.1} parent=103 // pred_check
          %p844 = pneg %p183
        $region114: #{tpu_custom_call.1} parent=103 // pred_check_branch
          %846 = sbr.rel (%p844) target = $region116
        $region115: #{tpu_custom_call.1} parent=103 // pred_region
          %848 = dma.done [#allocation9], 16
        $region116: #{tpu_custom_call.1} parent=103 // pred_fallthru
          _
        // Predicated region
        $region117: #{tpu_custom_call.1} parent=103 // pred_check
          %p849 = pneg %p225
        $region118: #{tpu_custom_call.1} parent=103 // pred_check_branch
          %851 = sbr.rel (%p849) target = $region120
        $region119: #{tpu_custom_call.1} parent=103 // pred_region
          %853 = dma.done [#allocation12], 16
        $region120: #{tpu_custom_call.1} parent=103 // pred_fallthru
          _
        // Predicated region
        $region121: #{tpu_custom_call.1} parent=103 // pred_check
          %p854 = pneg %p246
        $region122: #{tpu_custom_call.1} parent=103 // pred_check_branch
          %856 = sbr.rel (%p854) target = $region124
        $region123: #{tpu_custom_call.1} parent=103 // pred_region
          %858 = dma.done [#allocation12], 256
        $region124: #{tpu_custom_call.1} parent=103 // pred_fallthru
          _
        // Predicated region
        $region125: #{tpu_custom_call.1} parent=103 // pred_check
          %p859 = pneg %p267
        $region126: #{tpu_custom_call.1} parent=103 // pred_check_branch
          %861 = sbr.rel (%p859) target = $region128
        $region127: #{tpu_custom_call.1} parent=103 // pred_region
          %863 = dma.done [#allocation15], 16
        $region128: #{tpu_custom_call.1} parent=103 // pred_fallthru
          _
        // Predicated region
        $region129: #{tpu_custom_call.1} parent=103 // pred_check
          %p864 = pneg %p288
        $region130: #{tpu_custom_call.1} parent=103 // pred_check_branch
          %866 = sbr.rel (%p864) target = $region132
        $region131: #{tpu_custom_call.1} parent=103 // pred_region
          %868 = dma.done [#allocation15], 256
        $region132: #{tpu_custom_call.1} parent=103 // pred_fallthru
          _
        // Predicated region
        $region133: #{tpu_custom_call.1} parent=103 // pred_check
          %p869 = pneg %p309
        $region134: #{tpu_custom_call.1} parent=103 // pred_check_branch
          %871 = sbr.rel (%p869) target = $region136
        $region135: #{tpu_custom_call.1} parent=103 // pred_region
          %873 = dma.done [#allocation18], 16
        $region136: #{tpu_custom_call.1} parent=103 // pred_fallthru
          _
        // Predicated region
        $region137: #{tpu_custom_call.1} parent=103 // pred_check
          %p874 = pneg %p330
        $region138: #{tpu_custom_call.1} parent=103 // pred_check_branch
          %876 = sbr.rel (%p874) target = $region140
        $region139: #{tpu_custom_call.1} parent=103 // pred_region
          %878 = dma.done [#allocation18], 16
        $region140: #{tpu_custom_call.1} parent=103 // pred_fallthru
          _
        // Predicated region
        $region141: #{tpu_custom_call.1} parent=103 // pred_check
          %p879 = pneg %p351
        $region142: #{tpu_custom_call.1} parent=103 // pred_check_branch
          %881 = sbr.rel (%p879) target = $region144
        $region143: #{tpu_custom_call.1} parent=103 // pred_region
          %883 = dma.done [#allocation21], 16
        $region144: #{tpu_custom_call.1} parent=103 // pred_fallthru
          _
        // Predicated region
        $region145: #{tpu_custom_call.1} parent=103 // pred_check
          %p884 = pneg %p372
        $region146: #{tpu_custom_call.1} parent=103 // pred_check_branch
          %886 = sbr.rel (%p884) target = $region148
        $region147: #{tpu_custom_call.1} parent=103 // pred_region
          %888 = dma.done [#allocation21], 256
        $region148: #{tpu_custom_call.1} parent=103 // pred_fallthru
          _
        // Predicated region
        $region149: #{tpu_custom_call.1} parent=103 // pred_check
          %p889 = pneg %p393
        $region150: #{tpu_custom_call.1} parent=103 // pred_check_branch
          %891 = sbr.rel (%p889) target = $region152
        $region151: #{tpu_custom_call.1} parent=103 // pred_region
          %893 = dma.done [#allocation24], 16
        $region152: #{tpu_custom_call.1} parent=103 // pred_fallthru
          _
        %p894 = scmp.lt.s32.totalorder %s58, 1
        %s895 = scalar_select %p894, %s58, 1
        %p896 = scmp.lt.s32.totalorder %s59, 0
        %s897 = scalar_select %p896, %s59, 0
        %s898 = sadd.s32 %s897, %s895
        %s899 = smul.addr %s898, 8
        %s900 = scalar_lea.vmem %s0, %s899
        %p901 = pneg %p89
        %p902 = pneg %p86
        %s903 = sand.u32 %s102, 1
        %s904 = scalar_lea.sflag [#allocation6], %s903
        %s905 = sand.u32 %s102, 1
        %s906 = smul.addr %s905, 4
        %s907 = scalar_lea.vmem [#allocation5], %s906
        %p908 = pneg %p115
        %p909 = pneg %p112
        %s910 = sand.u32 %s54, 1
        %s911 = scalar_lea.sflag [#allocation9], %s910
        %s912 = sand.u32 %s128, 1
        %s913 = scalar_lea.vmem [#allocation8], %s912
        %p914 = pneg %p141
        %p915 = pneg %p138
        %p916 = pneg %p162
        %p917 = pneg %p159
        %p918 = pneg %p183
        %p919 = pneg %p180
        %p920 = pneg %p204
        %p921 = pneg %p201
        %p922 = pneg %p225
        %p923 = pneg %p222
        %p924 = pneg %p246
        %p925 = pneg %p243
        %p926 = pneg %p267
        %p927 = pneg %p264
        %p928 = pneg %p288
        %p929 = pneg %p285
        %p930 = pneg %p309
        %p931 = pneg %p306
        %p932 = pneg %p330
        %p933 = pneg %p327
        %p934 = pneg %p351
        %p935 = pneg %p348
        %p936 = pneg %p372
        %p937 = pneg %p369
        %p938 = pneg %p393
        %p939 = pneg %p390
        %p940 = pneg %p414
        %p941 = pneg %p411
        %p942 = pneg %p435
        %p943 = pneg %p432
        %p944 = pneg %p456
        %p945 = pneg %p453
        %p946 = pneg %p477
        %p947 = pneg %p474
        %p948 = pneg %p498
        %p949 = pneg %p495
        %p950 = pneg %p519
        %p951 = pneg %p516
        %p952 = pneg %p547
        %p953 = pneg %p544
        %s954 = sand.u32 %s534, 1
        %s955 = scalar_lea.sflag [#allocation7], %s954
        %s956 = sand.u32 %s534, 1
        %s957 = smul.addr %s956, 8
        %s958 = scalar_lea.vmem [#allocation25], %s957
        %p959 = pneg %p575
        %p960 = pneg %p572
        %s961 = sand.u32 %s54, 1
        %s962 = scalar_lea.sflag [#allocation27], %s961
        %s963 = sand.u32 %s562, 1
        %s964 = smul.addr %s963, 16
        %s965 = scalar_lea.vmem [#allocation26], %s964
        %p966 = pneg %p603
        %p967 = pneg %p600
        %s968 = sand.u32 %s54, 1
        %s969 = scalar_lea.sflag [#allocation27], %s968
        %s970 = sand.u32 %s590, 1
        %s971 = smul.addr %s970, 2
        %s972 = scalar_lea.vmem [#allocation28], %s971
        %p973 = scmp.lt.s32.totalorder %s58, 1
        %s974 = scalar_select %p973, %s58, 1
        %p975 = scmp.lt.s32.totalorder %s59, 0
        %s976 = scalar_select %p975, %s59, 0
        %s977 = sadd.s32 %s976, %s974
        %s978 = smul.addr %s977, 8
        %s979 = scalar_lea.vmem %s0, %s978
        %p981 = scmp.eq.s32.totalorder %s59, 0
        // Predicated region
        $region153: #{tpu_custom_call.1} parent=103 // pred_check
          %p982 = pneg %p981
        $region154: #{tpu_custom_call.1} parent=103 // pred_check_branch
          %984 = sbr.rel (%p982) target = $region156
        $region155: #{tpu_custom_call.1} parent=103 // pred_region
          %v985 = vld [vmem:[%s829] sm:$0xf]
          %v986 = vld [vmem:[%s5] sm:$0xf]
          %v987 = vld [vmem:[%s5 + $0x4] sm:$0xf]
          %v988 = vld [vmem:[%s5 + $0x8] sm:$0xf]
          %v989 = vld [vmem:[%s5 + $0xc] sm:$0xf]
          %v990 = vld [vmem:[#allocation11] sm:$0x1]
          %v992 = vperm.slane %v990, 0
          %v998 = vunpack.c.l.b16 %v986
          %v999 = vunpack.c.l.b16 %v987
          %v1000 = vunpack.c.l.b16 %v988
          %v1001 = vunpack.c.l.b16 %v989
          %v1002 = vpack.c.b16 %v999, %v998
          %v1003 = vpack.c.b16 %v1001, %v1000
          %vm1006 = vcmask 261120
          %v1008 = vsel %vm1006, %v985, 0
          %1010 = vmatpush.bf16.msra.mxu0 0
          %1011 = vmatpush.bf16.msra.mxu0 0
          %1012 = vmatpush.bf16.msra.mxu0 0
          %1013 = vmatpush.bf16.msra.mxu0 0
          %1014 = vmatpush.bf16.msra.mxu0 0
          %1015 = vmatpush.bf16.msra.mxu0 0
          %1016 = vmatpush.bf16.msra.mxu0 %v1003
          %1017 = vmatpush.bf16.msra.mxu0 %v1002
          %1018 = vmatmul.bf16.gmra.mxu0 %v1008
          %v1019 = vpop.f32.mrf.mxu0
          %v1020 = vadd.f32 %v992, %v1019
          %v1021 = vpop.f32.mrf.mxu0
          %1022 = vdwg.mxu0
          %v1023 = vld [vmem:[#allocation13] sm:$0xf]
          %v1024 = vld [vmem:[#allocation13 + $0x4] sm:$0xf]
          %v1025 = vld [vmem:[#allocation13 + $0x8] sm:$0xf]
          %v1026 = vld [vmem:[#allocation13 + $0xc] sm:$0xf]
          %v1027 = vld [vmem:[#allocation14] sm:$0x1]
          %v1029 = vperm.slane %v1027, 0
          %v1035 = vunpack.c.l.b16 %v1023
          %v1036 = vunpack.c.l.b16 %v1024
          %v1037 = vunpack.c.l.b16 %v1025
          %v1038 = vunpack.c.l.b16 %v1026
          %v1039 = vpack.c.b16 %v1036, %v1035
          %v1040 = vpack.c.b16 %v1038, %v1037
          %1043 = vmatpush.bf16.msra.mxu0 0
          %1044 = vmatpush.bf16.msra.mxu0 0
          %1045 = vmatpush.bf16.msra.mxu0 0
          %1046 = vmatpush.bf16.msra.mxu0 0
          %1047 = vmatpush.bf16.msra.mxu0 0
          %1048 = vmatpush.bf16.msra.mxu0 0
          %1049 = vmatpush.bf16.msra.mxu0 %v1040
          %1050 = vmatpush.bf16.msra.mxu0 %v1039
          %1051 = vmatmul.bf16.gmra.mxu0 %v1008
          %v1052 = vpop.f32.mrf.mxu0
          %v1053 = vadd.f32 %v1029, %v1052
          %v1054 = vpop.f32.mrf.mxu0
          %1055 = vdwg.mxu0
          %v1056 = vpack.c.bf16 %v1020, %v1020
          %vm1057 = vcmask 257024
          %1058 = vst.msk [vmem:[#allocation2] sm:$0xf] %vm1057, %v1056
          %v1059 = vpack.c.bf16 %v1053, %v1053
          %1060 = vst.msk [vmem:[#allocation3] sm:$0xf] %vm1057, %v1059
        $region156: #{tpu_custom_call.1} parent=103 // pred_fallthru
          _
        %v1061 = vld [vmem:[%s979] sm:$0xff]
        %v1062 = vpack.c.bf16 %v1061, %v1061
        %v1063 = vld [vmem:[%s3] sm:$0xf]
        %v1064 = vld [vmem:[%s3 + $0x4] sm:$0xf]
        %v1065 = vld [vmem:[%s3 + $0x8] sm:$0xf]
        %v1066 = vld [vmem:[%s3 + $0xc] sm:$0xf]
        %v1067 = vld [vmem:[#allocation10] sm:$0x1]
        %v1069 = vperm.slane %v1067, 0
        %v1075 = vunpack.c.l.b16 %v1063
        %v1076 = vunpack.c.l.b16 %v1064
        %v1077 = vunpack.c.l.b16 %v1065
        %v1078 = vunpack.c.l.b16 %v1066
        %v1079 = vpack.c.b16 %v1076, %v1075
        %v1080 = vpack.c.b16 %v1078, %v1077
        %vm1083 = vcmask 261120
        %v1085 = vsel %vm1083, %v1062, 0
        %1087 = vmatpush.bf16.msra.mxu0 0
        %1088 = vmatpush.bf16.msra.mxu0 0
        %1089 = vmatpush.bf16.msra.mxu0 0
        %1090 = vmatpush.bf16.msra.mxu0 0
        %1091 = vmatpush.bf16.msra.mxu0 0
        %1092 = vmatpush.bf16.msra.mxu0 0
        %1093 = vmatpush.bf16.msra.mxu0 %v1080
        %1094 = vmatpush.bf16.msra.mxu0 %v1079
        %1095 = vmatmul.bf16.gmra.mxu0 %v1085
        %v1096 = vpop.f32.mrf.mxu0
        %v1097 = vadd.f32 %v1069, %v1096
        %v1098 = vpop.f32.mrf.mxu0
        %1099 = vdwg.mxu0
        %v1100 = vld [vmem:[%s838] sm:$0x1]
        %v1102 = vperm.slane %v1100, 0
        %v1104 = vpack.c.bf16 %v1097, %v1097
        %v1105 = vld [vmem:[#allocation2] sm:$0xf]
        %v1106 = vld [vmem:[#allocation3] sm:$0xf]
        %vm1107 = vcmask 64512
        %v1109 = vsel %vm1107, %v1104, 0
        %v1112 = vsel %vm1107, %v1105, 0
        %1114 = vmatpush.bf16.xpose.msra.mxu0 0
        %1115 = vmatpush.bf16.xpose.msra.mxu0 0
        %1116 = vmatpush.bf16.xpose.msra.mxu0 0
        %1117 = vmatpush.bf16.xpose.msra.mxu0 0
        %1118 = vmatpush.bf16.xpose.msra.mxu0 0
        %1119 = vmatpush.bf16.xpose.msra.mxu0 0
        %1120 = vmatpush.bf16.xpose.msra.mxu0 0
        %1121 = vmatpush.bf16.xpose.msra.mxu0 %v1112
        %1122 = vmatmul.bf16.gmra.mxu0 %v1109
        %v1123 = vpop.f32.mrf.mxu0
        %v1124 = vadd.f32 %v1102, %v1123
        %v1125 = vpop.f32.mrf.mxu0
        %1126 = vdwg.mxu0
        %v1127 = vsel %vm1107, %v1124, -inf
        %1128 = vmax.xlane.f32.xlu0 %v1127
        %v1129 = vpop.xlane.xlu0 %1128
        %v1130 = vsub.f32 %v1124, %v1129
        %v1131 = vmul.f32 %v1130, 1.442695
        %v1132 = vpow.pop %v1131
        %v1133 = vsel %vm1107, %v1132, 0.0
        %1134 = vadd.xlane.f32.xlu0 %v1133
        %v1135 = vpop.xlane.xlu0 %1134
        %v1136 = vrcp.pop %v1135
        %v1137 = vmul.f32 %v1132, %v1136
        %v1138 = vpack.c.bf16 %v1137, %v1137
        %vm1139 = vcmask 60416
        %1140 = vst.msk [vmem:[%s965] sm:$0xf] %vm1139, %v1138
        %v1142 = vsel %vm1107, %v1138, 0
        %vm1144 = vcmask 1043456
        %v1146 = vsel %vm1144, %v1106, 0
        %1148 = vmatpush.bf16.msra.mxu0 0
        %1149 = vmatpush.bf16.msra.mxu0 0
        %1150 = vmatpush.bf16.msra.mxu0 0
        %1151 = vmatpush.bf16.msra.mxu0 0
        %1152 = vmatpush.bf16.msra.mxu0 0
        %1153 = vmatpush.bf16.msra.mxu0 0
        %1154 = vmatpush.bf16.msra.mxu0 0
        %1155 = vmatpush.bf16.msra.mxu0 %v1146
        %1156 = vmatmul.bf16.gmra.mxu0 %v1142
        %v1157 = vpop.f32.mrf.mxu0
        %v1158 = vadd.f32 0.0, %v1157
        %v1159 = vpop.f32.mrf.mxu0
        %1160 = vdwg.mxu0
        %v1161 = vpack.c.bf16 %v1158, %v1158
        %v1162 = vld [vmem:[#allocation2] sm:$0xf]
        %v1163 = vld [vmem:[#allocation3] sm:$0xf]
        %v1165 = vunpack.c.l.b16 %v1104
        %v1166 = vpack.c.b16 %v1165, %v1165
        %1167 = vrot.lane.b32.xlu0 %v1166, 120
        %v1168 = vpop.permute.xlu0 %1167
        %v1170 = vunpack.c.l.b16 %v1162
        %v1171 = vpack.c.b16 %v1170, %v1170
        %1172 = vrot.lane.b32.xlu0 %v1171, 120
        %v1173 = vpop.permute.xlu0 %1172
        %v1175 = vsel %vm1107, %v1168, 0
        %v1178 = vsel %vm1107, %v1173, 0
        %1180 = vmatpush.bf16.xpose.msra.mxu0 0
        %1181 = vmatpush.bf16.xpose.msra.mxu0 0
        %1182 = vmatpush.bf16.xpose.msra.mxu0 0
        %1183 = vmatpush.bf16.xpose.msra.mxu0 0
        %1184 = vmatpush.bf16.xpose.msra.mxu0 0
        %1185 = vmatpush.bf16.xpose.msra.mxu0 0
        %1186 = vmatpush.bf16.xpose.msra.mxu0 0
        %1187 = vmatpush.bf16.xpose.msra.mxu0 %v1178
        %1188 = vmatmul.bf16.gmra.mxu0 %v1175
        %v1189 = vpop.f32.mrf.mxu0
        %v1190 = vadd.f32 %v1102, %v1189
        %v1191 = vpop.f32.mrf.mxu0
        %1192 = vdwg.mxu0
        %v1193 = vsel %vm1107, %v1190, -inf
        %1194 = vmax.xlane.f32.xlu0 %v1193
        %v1195 = vpop.xlane.xlu0 %1194
        %v1196 = vsub.f32 %v1190, %v1195
        %v1197 = vmul.f32 %v1196, 1.442695
        %v1198 = vpow.pop %v1197
        %v1199 = vsel %vm1107, %v1198, 0.0
        %1200 = vadd.xlane.f32.xlu0 %v1199
        %v1201 = vpop.xlane.xlu0 %1200
        %v1202 = vrcp.pop %v1201
        %v1203 = vmul.f32 %v1198, %v1202
        %v1204 = vpack.c.bf16 %v1203, %v1203
        %s1205 = scalar_lea.vmem %s965, 4 [#allocation26]
        %1206 = vst.msk [vmem:[%s1205] sm:$0xf] %vm1139, %v1204
        %v1208 = vunpack.c.l.b16 %v1163
        %v1209 = vpack.c.b16 %v1208, %v1208
        %1210 = vrot.lane.b32.xlu0 %v1209, 120
        %v1211 = vpop.permute.xlu0 %1210
        %v1213 = vsel %vm1107, %v1204, 0
        %v1216 = vsel %vm1144, %v1211, 0
        %1218 = vmatpush.bf16.msra.mxu0 0
        %1219 = vmatpush.bf16.msra.mxu0 0
        %1220 = vmatpush.bf16.msra.mxu0 0
        %1221 = vmatpush.bf16.msra.mxu0 0
        %1222 = vmatpush.bf16.msra.mxu0 0
        %1223 = vmatpush.bf16.msra.mxu0 0
        %1224 = vmatpush.bf16.msra.mxu0 0
        %1225 = vmatpush.bf16.msra.mxu0 %v1216
        %1226 = vmatmul.bf16.gmra.mxu0 %v1213
        %v1227 = vpop.f32.mrf.mxu0
        %v1228 = vadd.f32 0.0, %v1227
        %v1229 = vpop.f32.mrf.mxu0
        %1230 = vdwg.mxu0
        %v1231 = vpack.c.bf16 %v1228, %v1228
        %v1232 = vld [vmem:[#allocation2] sm:$0xf]
        %v1233 = vld [vmem:[#allocation3] sm:$0xf]
        %1234 = vrot.lane.b32.xlu0 %v1166, 112
        %v1235 = vpop.permute.xlu0 %1234
        %v1237 = vunpack.c.l.b16 %v1232
        %v1238 = vpack.c.b16 %v1237, %v1237
        %1239 = vrot.lane.b32.xlu0 %v1238, 112
        %v1240 = vpop.permute.xlu0 %1239
        %v1242 = vsel %vm1107, %v1235, 0
        %v1245 = vsel %vm1107, %v1240, 0
        %1247 = vmatpush.bf16.xpose.msra.mxu0 0
        %1248 = vmatpush.bf16.xpose.msra.mxu0 0
        %1249 = vmatpush.bf16.xpose.msra.mxu0 0
        %1250 = vmatpush.bf16.xpose.msra.mxu0 0
        %1251 = vmatpush.bf16.xpose.msra.mxu0 0
        %1252 = vmatpush.bf16.xpose.msra.mxu0 0
        %1253 = vmatpush.bf16.xpose.msra.mxu0 0
        %1254 = vmatpush.bf16.xpose.msra.mxu0 %v1245
        %1255 = vmatmul.bf16.gmra.mxu0 %v1242
        %v1256 = vpop.f32.mrf.mxu0
        %v1257 = vadd.f32 %v1102, %v1256
        %v1258 = vpop.f32.mrf.mxu0
        %1259 = vdwg.mxu0
        %v1260 = vsel %vm1107, %v1257, -inf
        %1261 = vmax.xlane.f32.xlu0 %v1260
        %v1262 = vpop.xlane.xlu0 %1261
        %v1263 = vsub.f32 %v1257, %v1262
        %v1264 = vmul.f32 %v1263, 1.442695
        %v1265 = vpow.pop %v1264
        %v1266 = vsel %vm1107, %v1265, 0.0
        %1267 = vadd.xlane.f32.xlu0 %v1266
        %v1268 = vpop.xlane.xlu0 %1267
        %v1269 = vrcp.pop %v1268
        %v1270 = vmul.f32 %v1265, %v1269
        %v1271 = vpack.c.bf16 %v1270, %v1270
        %s1272 = scalar_lea.vmem %s965, 8 [#allocation26]
        %1273 = vst.msk [vmem:[%s1272] sm:$0xf] %vm1139, %v1271
        %v1275 = vunpack.c.l.b16 %v1233
        %v1276 = vpack.c.b16 %v1275, %v1275
        %1277 = vrot.lane.b32.xlu0 %v1276, 112
        %v1278 = vpop.permute.xlu0 %1277
        %v1280 = vsel %vm1107, %v1271, 0
        %v1283 = vsel %vm1144, %v1278, 0
        %1285 = vmatpush.bf16.msra.mxu0 0
        %1286 = vmatpush.bf16.msra.mxu0 0
        %1287 = vmatpush.bf16.msra.mxu0 0
        %1288 = vmatpush.bf16.msra.mxu0 0
        %1289 = vmatpush.bf16.msra.mxu0 0
        %1290 = vmatpush.bf16.msra.mxu0 0
        %1291 = vmatpush.bf16.msra.mxu0 0
        %1292 = vmatpush.bf16.msra.mxu0 %v1283
        %1293 = vmatmul.bf16.gmra.mxu0 %v1280
        %v1294 = vpop.f32.mrf.mxu0
        %v1295 = vadd.f32 0.0, %v1294
        %v1296 = vpop.f32.mrf.mxu0
        %1297 = vdwg.mxu0
        %v1298 = vpack.c.bf16 %v1295, %v1295
        %v1299 = vld [vmem:[#allocation2] sm:$0xf]
        %v1300 = vld [vmem:[#allocation3] sm:$0xf]
        %1301 = vrot.lane.b32.xlu0 %v1166, 104
        %v1302 = vpop.permute.xlu0 %1301
        %v1304 = vunpack.c.l.b16 %v1299
        %v1305 = vpack.c.b16 %v1304, %v1304
        %1306 = vrot.lane.b32.xlu0 %v1305, 104
        %v1307 = vpop.permute.xlu0 %1306
        %v1309 = vsel %vm1107, %v1302, 0
        %v1312 = vsel %vm1107, %v1307, 0
        %1314 = vmatpush.bf16.xpose.msra.mxu0 0
        %1315 = vmatpush.bf16.xpose.msra.mxu0 0
        %1316 = vmatpush.bf16.xpose.msra.mxu0 0
        %1317 = vmatpush.bf16.xpose.msra.mxu0 0
        %1318 = vmatpush.bf16.xpose.msra.mxu0 0
        %1319 = vmatpush.bf16.xpose.msra.mxu0 0
        %1320 = vmatpush.bf16.xpose.msra.mxu0 0
        %1321 = vmatpush.bf16.xpose.msra.mxu0 %v1312
        %1322 = vmatmul.bf16.gmra.mxu0 %v1309
        %v1323 = vpop.f32.mrf.mxu0
        %v1324 = vadd.f32 %v1102, %v1323
        %v1325 = vpop.f32.mrf.mxu0
        %1326 = vdwg.mxu0
        %v1327 = vsel %vm1107, %v1324, -inf
        %1328 = vmax.xlane.f32.xlu0 %v1327
        %v1329 = vpop.xlane.xlu0 %1328
        %v1330 = vsub.f32 %v1324, %v1329
        %v1331 = vmul.f32 %v1330, 1.442695
        %v1332 = vpow.pop %v1331
        %v1333 = vsel %vm1107, %v1332, 0.0
        %1334 = vadd.xlane.f32.xlu0 %v1333
        %v1335 = vpop.xlane.xlu0 %1334
        %v1336 = vrcp.pop %v1335
        %v1337 = vmul.f32 %v1332, %v1336
        %v1338 = vpack.c.bf16 %v1337, %v1337
        %s1339 = scalar_lea.vmem %s965, 12 [#allocation26]
        %1340 = vst.msk [vmem:[%s1339] sm:$0xf] %vm1139, %v1338
        %v1342 = vunpack.c.l.b16 %v1300
        %v1343 = vpack.c.b16 %v1342, %v1342
        %1344 = vrot.lane.b32.xlu0 %v1343, 104
        %v1345 = vpop.permute.xlu0 %1344
        %v1347 = vsel %vm1107, %v1338, 0
        %v1350 = vsel %vm1144, %v1345, 0
        %1352 = vmatpush.bf16.msra.mxu0 0
        %1353 = vmatpush.bf16.msra.mxu0 0
        %1354 = vmatpush.bf16.msra.mxu0 0
        %1355 = vmatpush.bf16.msra.mxu0 0
        %1356 = vmatpush.bf16.msra.mxu0 0
        %1357 = vmatpush.bf16.msra.mxu0 0
        %1358 = vmatpush.bf16.msra.mxu0 0
        %1359 = vmatpush.bf16.msra.mxu0 %v1350
        %1360 = vmatmul.bf16.gmra.mxu0 %v1347
        %v1361 = vpop.f32.mrf.mxu0
        %v1362 = vadd.f32 0.0, %v1361
        %v1363 = vpop.f32.mrf.mxu0
        %1364 = vdwg.mxu0
        %v1365 = vpack.c.bf16 %v1362, %v1362
        %v1367 = vunpack.c.l.b16 %v1231
        %v1368 = vpack.c.b16 %v1367, %v1367
        %1369 = vrot.lane.b32.xlu0 %v1368, 8
        %v1370 = vpop.permute.xlu0 %1369
        %v1372 = vunpack.c.l.b16 %v1298
        %v1373 = vpack.c.b16 %v1372, %v1372
        %1374 = vrot.lane.b32.xlu0 %v1373, 16
        %v1375 = vpop.permute.xlu0 %1374
        %v1377 = vunpack.c.l.b16 %v1365
        %v1378 = vpack.c.b16 %v1377, %v1377
        %1379 = vrot.lane.b32.xlu0 %v1378, 24
        %v1380 = vpop.permute.xlu0 %1379
        %v1383 = vsel %vm1107, %v1161, %v1370
        %vm1384 = vcmask 130048
        %v1386 = vsel %vm1384, %v1383, %v1375
        %vm1387 = vcmask 195584
        %v1389 = vsel %vm1387, %v1386, %v1380
        %v1390 = vld [vmem:[#allocation16] sm:$0xf]
        %v1391 = vld [vmem:[#allocation16 + $0x4] sm:$0xf]
        %v1392 = vld [vmem:[#allocation16 + $0x8] sm:$0xf]
        %v1393 = vld [vmem:[#allocation16 + $0xc] sm:$0xf]
        %v1394 = vld [vmem:[#allocation17] sm:$0x1]
        %v1396 = vperm.slane %v1394, 0
        %v1402 = vunpack.c.l.b16 %v1390
        %v1403 = vunpack.c.l.b16 %v1391
        %v1404 = vunpack.c.l.b16 %v1392
        %v1405 = vunpack.c.l.b16 %v1393
        %v1406 = vpack.c.b16 %v1403, %v1402
        %v1407 = vpack.c.b16 %v1405, %v1404
        %v1410 = vsel %vm1083, %v1389, 0
        %1412 = vmatpush.bf16.msra.mxu0 0
        %1413 = vmatpush.bf16.msra.mxu0 0
        %1414 = vmatpush.bf16.msra.mxu0 0
        %1415 = vmatpush.bf16.msra.mxu0 0
        %1416 = vmatpush.bf16.msra.mxu0 0
        %1417 = vmatpush.bf16.msra.mxu0 0
        %1418 = vmatpush.bf16.msra.mxu0 %v1407
        %1419 = vmatpush.bf16.msra.mxu0 %v1406
        %1420 = vmatmul.bf16.gmra.mxu0 %v1410
        %v1421 = vpop.f32.mrf.mxu0
        %v1422 = vadd.f32 %v1396, %v1421
        %v1423 = vpop.f32.mrf.mxu0
        %1424 = vdwg.mxu0
        %v1425 = vadd.f32 %v1061, %v1422
        %v1426 = vsel %vm1083, %v1425, 0.0
        %1427 = vadd.xlane.f32.xlu0 %v1426
        %v1428 = vpop.xlane.xlu0 %1427
        %v1429 = vrcp.pop 32.0
        %v1430 = vmul.f32 32.0, %v1429
        %v1431 = vsub.f32 1.0, %v1430
        %v1432 = vmul.f32 %v1429, %v1431
        %v1433 = vadd.f32 %v1429, %v1432
        %vm1434 = vweird.f32 %v1429
        %v1435 = vsel %vm1434, %v1429, %v1433
        %v1436 = vmul.f32 %v1428, %v1435
        %v1437 = vsub.f32 %v1425, %v1436
        %v1438 = vmul.f32 %v1437, %v1437
        %v1439 = vsel %vm1083, %v1438, 0.0
        %1440 = vadd.xlane.f32.xlu0 %v1439
        %v1441 = vpop.xlane.xlu0 %1440
        %v1442 = vmul.f32 %v1441, %v1435
        %v1443 = vadd.f32 %v1442, 1e-05
        %v1444 = vrsqrt.pop %v1443
        %v1445 = vmul.f32 %v1444, %v1443
        %v1446 = vmul.f32 %v1445, %v1444
        %v1447 = vmul.f32 0.5, %v1446
        %v1448 = vsub.f32 1.5, %v1447
        %v1449 = vmul.f32 %v1444, %v1448
        %vm1450 = vweird.f32 %v1443
        %vm1451 = vweird.f32 %v1444
        %vm1452 = vmor %vm1450, %vm1451
        %v1453 = vsel %vm1452, %v1444, %v1449
        %v1454 = vmul.f32 %v1437, %v1453
        %v1455 = vld [vmem:[#allocation19] sm:$0x1]
        %v1457 = vperm.slane %v1455, 0
        %v1459 = vmul.f32 %v1454, %v1457
        %v1460 = vld [vmem:[#allocation20] sm:$0x1]
        %v1462 = vperm.slane %v1460, 0
        %v1464 = vadd.f32 %v1459, %v1462
        %v1465 = vpack.c.bf16 %v1464, %v1464
        %v1466 = vld [vmem:[#allocation22] sm:$0xf]
        %v1467 = vld [vmem:[#allocation22 + $0x4] sm:$0xf]
        %v1468 = vld [vmem:[#allocation22 + $0x8] sm:$0xf]
        %v1469 = vld [vmem:[#allocation22 + $0xc] sm:$0xf]
        %v1470 = vld [vmem:[#allocation23] sm:$0x1]
        %v1472 = vperm.slane %v1470, 0
        %v1478 = vunpack.c.l.b16 %v1466
        %v1479 = vunpack.c.l.b16 %v1467
        %v1480 = vunpack.c.l.b16 %v1468
        %v1481 = vunpack.c.l.b16 %v1469
        %v1482 = vpack.c.b16 %v1479, %v1478
        %v1483 = vpack.c.b16 %v1481, %v1480
        %v1487 = vsel %vm1083, %v1465, 0
        %1489 = vmatpush.bf16.msra.mxu0 0
        %1490 = vmatpush.bf16.msra.mxu0 0
        %1491 = vmatpush.bf16.msra.mxu0 0
        %1492 = vmatpush.bf16.msra.mxu0 0
        %1493 = vmatpush.bf16.msra.mxu0 0
        %1494 = vmatpush.bf16.msra.mxu0 0
        %1495 = vmatpush.bf16.msra.mxu0 %v1483
        %1496 = vmatpush.bf16.msra.mxu0 %v1482
        %1497 = vmatmul.bf16.gmra.mxu0 %v1487
        %v1498 = vpop.f32.mrf.mxu0
        %v1499 = vadd.f32 %v1472, %v1498
        %v1500 = vpop.f32.mrf.mxu0
        %1501 = vdwg.mxu0
        %v1502 = vmax.f32 %v1499, 0.0
        %v1503 = vpack.c.bf16 %v1502, %v1502
        %v1504 = vld [vmem:[%s15] sm:$0xf]
        %v1505 = vld [vmem:[%s15 + $0x4] sm:$0xf]
        %v1506 = vld [vmem:[%s15 + $0x8] sm:$0xf]
        %v1507 = vld [vmem:[%s15 + $0xc] sm:$0xf]
        %v1508 = vld [vmem:[%s15 + $0x10] sm:$0xf]
        %v1509 = vld [vmem:[%s15 + $0x14] sm:$0xf]
        %v1510 = vld [vmem:[%s15 + $0x18] sm:$0xf]
        %v1511 = vld [vmem:[%s15 + $0x1c] sm:$0xf]
        %v1512 = vld [vmem:[%s16] sm:$0x1]
        %v1514 = vperm.slane %v1512, 0
        %v1524 = vunpack.c.l.b16 %v1504
        %v1525 = vunpack.c.l.b16 %v1505
        %v1526 = vunpack.c.l.b16 %v1506
        %v1527 = vunpack.c.l.b16 %v1507
        %v1528 = vunpack.c.l.b16 %v1508
        %v1529 = vunpack.c.l.b16 %v1509
        %v1530 = vunpack.c.l.b16 %v1510
        %v1531 = vunpack.c.l.b16 %v1511
        %v1532 = vpack.c.b16 %v1525, %v1524
        %v1533 = vpack.c.b16 %v1527, %v1526
        %v1534 = vpack.c.b16 %v1529, %v1528
        %v1535 = vpack.c.b16 %v1531, %v1530
        %vm1540 = vcmask 523264
        %v1542 = vsel %vm1540, %v1503, 0
        %1544 = vmatpush.bf16.msra.mxu0 0
        %1545 = vmatpush.bf16.msra.mxu0 0
        %1546 = vmatpush.bf16.msra.mxu0 0
        %1547 = vmatpush.bf16.msra.mxu0 0
        %1548 = vmatpush.bf16.msra.mxu0 %v1535
        %1549 = vmatpush.bf16.msra.mxu0 %v1534
        %1550 = vmatpush.bf16.msra.mxu0 %v1533
        %1551 = vmatpush.bf16.msra.mxu0 %v1532
        %1552 = vmatmul.bf16.gmra.mxu0 %v1542
        %v1553 = vpop.f32.mrf.mxu0
        %v1554 = vadd.f32 %v1514, %v1553
        %v1555 = vpop.f32.mrf.mxu0
        %1556 = vdwg.mxu0
        %v1557 = vadd.f32 %v1464, %v1554
        %v1558 = vsel %vm1083, %v1557, 0.0
        %1559 = vadd.xlane.f32.xlu0 %v1558
        %v1560 = vpop.xlane.xlu0 %1559
        %v1561 = vmul.f32 %v1560, %v1435
        %v1562 = vsub.f32 %v1557, %v1561
        %v1563 = vmul.f32 %v1562, %v1562
        %v1564 = vsel %vm1083, %v1563, 0.0
        %1565 = vadd.xlane.f32.xlu0 %v1564
        %v1566 = vpop.xlane.xlu0 %1565
        %v1567 = vmul.f32 %v1566, %v1435
        %v1568 = vadd.f32 %v1567, 1e-05
        %v1569 = vrsqrt.pop %v1568
        %v1570 = vmul.f32 %v1569, %v1568
        %v1571 = vmul.f32 %v1570, %v1569
        %v1572 = vmul.f32 0.5, %v1571
        %v1573 = vsub.f32 1.5, %v1572
        %v1574 = vmul.f32 %v1569, %v1573
        %vm1575 = vweird.f32 %v1568
        %vm1576 = vweird.f32 %v1569
        %vm1577 = vmor %vm1575, %vm1576
        %v1578 = vsel %vm1577, %v1569, %v1574
        %v1579 = vmul.f32 %v1562, %v1578
        %v1580 = vld [vmem:[%s17] sm:$0x1]
        %v1582 = vperm.slane %v1580, 0
        %v1584 = vmul.f32 %v1579, %v1582
        %v1585 = vld [vmem:[%s18] sm:$0x1]
        %v1587 = vperm.slane %v1585, 0
        %v1589 = vadd.f32 %v1584, %v1587
        %1590 = vst.msk [vmem:[%s958] sm:$0xff] %vm1083, %v1589
        %v1591 = vld [vmem:[%s19] sm:$0x1]
        %v1593 = vperm.slane %v1591, 0
        %v1595 = vmul.f32 %v1589, %v1593
        %v1596 = vsel %vm1083, %v1595, 0.0
        %1597 = vadd.xlane.f32.xlu0 %v1596
        %v1598 = vpop.xlane.xlu0 %1597
        %v1599 = vld [vmem:[#allocation4] sm:$0x1]
        %1601 = vset.pattern.permute.xlu0 0
        %1602 = vperm.xlu0 %1601, %v1599
        %v1603 = vpop.permute.xlu0 %1602
        %v1605 = vperm.slane %v1603, 0
        %v1606 = vadd.f32 %v1598, %v1605
        %v1607 = vxor.u32 %v1606, 2147483648
        %v1608 = vmul.f32 %v1607, 1.442695
        %v1609 = vpow.pop %v1608
        %v1610 = vadd.f32 %v1609, 1.0
        %v1611 = vrcp.pop %v1610
        %v1612 = vmul.f32 %v1610, %v1611
        %v1613 = vsub.f32 1.0, %v1612
        %v1614 = vmul.f32 %v1611, %v1613
        %v1615 = vadd.f32 %v1611, %v1614
        %vm1616 = vweird.f32 %v1610
        %vm1617 = vweird.f32 %v1611
        %vm1618 = vmor %vm1616, %vm1617
        %v1619 = vsel %vm1618, %v1611, %v1615
        %v1620 = vand.u32 2147483647, %v1610
        %vm1621 = vcmp.eq.f32.partialorder %v1620, 8.507059e+37
        %v1622 = vand.u32 %v1610, 2147483648
        %v1623 = vor.u32 1.1754944e-38, %v1622
        %v1624 = vsel %vm1621, %v1623, %v1619
        %v1625 = vmul.f32 1.0, %v1624
        %v1627 = vlaneseq
        %v1628 = vand.u32 %v1627, 127
        %v1629 = vperm.slane %v1606, %v1628
        %v1632 = vperm.slane %v1625, %v1628
        %vm1634 = vcmask 1040384
        %v1635 = vsel %vm1634, %v1629, %v1632
        %vm1636 = vcmask 58368
        %1637 = vst.msk [vmem:[%s972] sm:$0x3] %vm1636, %v1635
        %s1638 = sand.u32 %s534, 1
        %s1639 = scalar_lea.sflag [#allocation7], %s1638
        %s1640 = sand.u32 %s534, 1
        %s1641 = smul.addr %s1640, 8
        %s1642 = scalar_lea.vmem [#allocation25], %s1641
        %s1643 = sand.u32 %s54, 1
        %s1644 = scalar_lea.sflag [#allocation27], %s1643
        %s1645 = sand.u32 %s562, 1
        %s1646 = smul.addr %s1645, 16
        %s1647 = scalar_lea.vmem [#allocation26], %s1646
        %s1648 = sand.u32 %s54, 1
        %s1649 = scalar_lea.sflag [#allocation27], %s1648
        %s1650 = sand.u32 %s590, 1
        %s1651 = smul.addr %s1650, 2
        %s1652 = scalar_lea.vmem [#allocation28], %s1651
        // Predicated region
        $region157: #{tpu_custom_call.1} parent=103 // pred_check
          %p1653 = pneg %p544
        $region158: #{tpu_custom_call.1} parent=103 // pred_check_branch
          %1655 = sbr.rel (%p1653) target = $region160
        $region159: #{tpu_custom_call.1} parent=103 // pred_region
          %1657 = vsyncadd %s1639, 0
          %s1658 = sadd.s32 %s59, %s58
          %s1659 = smul.addr %s1658, 8
          %s1660 = scalar_lea.hbm %s21, %s1659
          %s1662 = sshll.u32 %s1642, 4
          %s1663 = int_to_ptr.vmem [resolvable:$true] %s1662
          %s1664 = sshll.u32 %s1660, 4
          %s1665 = int_to_ptr.hbm [resolvable:$true] %s1664
          %1667 = dma.vmem_to_hbm [thread:$0]  %s1663, 128, %s1665, %s1639
        $region160: #{tpu_custom_call.1} parent=103 // pred_fallthru
          _
        // Predicated region
        $region161: #{tpu_custom_call.1} parent=103 // pred_check
          %p1668 = pneg %p572
        $region162: #{tpu_custom_call.1} parent=103 // pred_check_branch
          %1670 = sbr.rel (%p1668) target = $region164
        $region163: #{tpu_custom_call.1} parent=103 // pred_region
          %1672 = vsyncadd %s1644, 0
          %s1673 = smul.addr %s58, 4
          %s1674 = sadd.s32 %s59, %s1673
          %s1675 = smul.addr %s1674, 4
          %s1676 = scalar_lea.hbm %s22, %s1675
          %s1677 = sshll.u32 %s1647, 4
          %s1678 = int_to_ptr.vmem [resolvable:$true] %s1677
          %s1679 = sshll.u32 %s1676, 4
          %s1680 = int_to_ptr.hbm [resolvable:$true] %s1679
          %1685 = dma.vmem_to_hbm [thread:$0]  %s1678, 256, %s1680, %s1644, 64, 64, 4
        $region164: #{tpu_custom_call.1} parent=103 // pred_fallthru
          _
        // Predicated region
        $region165: #{tpu_custom_call.1} parent=103 // pred_check
          %p1686 = pneg %p600
        $region166: #{tpu_custom_call.1} parent=103 // pred_check_branch
          %1688 = sbr.rel (%p1686) target = $region168
        $region167: #{tpu_custom_call.1} parent=103 // pred_region
          %1690 = vsyncadd %s1649, 0
          %s1691 = sadd.s32 %s59, %s58
          %s1692 = smul.addr %s1691, 2
          %s1693 = scalar_lea.hbm %s23, %s1692
          %s1695 = sshll.u32 %s1652, 4
          %s1696 = int_to_ptr.vmem [resolvable:$true] %s1695
          %s1697 = sshll.u32 %s1693, 4
          %s1698 = int_to_ptr.hbm [resolvable:$true] %s1697
          %1700 = dma.vmem_to_hbm [thread:$0]  %s1696, 32, %s1698, %s1649
        $region168: #{tpu_custom_call.1} parent=103 // pred_fallthru
          _
      $region104: #{tpu_custom_call.1} parent=5 // pred_fallthru
        _
      %p1701 = scmp.le.s32.totalorder 2, %s49
      // Predicated region
      $region169: #{tpu_custom_call.1} parent=5 // pred_check
        %p1702 = pneg %p1701
      $region170: #{tpu_custom_call.1} parent=5 // pred_check_branch
        %1704 = sbr.rel (%p1702) target = $region172
      $region171: #{tpu_custom_call.1} parent=5 // pred_region
        %s1705 = ssub.s32 %s49, 2
        // Predicated region
        $region173: #{tpu_custom_call.1} parent=171 // pred_check
          %p1706 = pneg %p550
        $region174: #{tpu_custom_call.1} parent=171 // pred_check_branch
          %1708 = sbr.rel (%p1706) target = $region176
        $region175: #{tpu_custom_call.1} parent=171 // pred_region
          %s1709 = sand.u32 %s535, 1
          %s1710 = scalar_lea.sflag [#allocation7], %s1709
          %s1711 = sand.u32 %s535, 1
          %s1712 = smul.addr %s1711, 8
          %s1713 = scalar_lea.vmem [#allocation25], %s1712
          %1715 = dma.done %s1710, 128
        $region176: #{tpu_custom_call.1} parent=171 // pred_fallthru
          _
        // Predicated region
        $region177: #{tpu_custom_call.1} parent=171 // pred_check
          %p1716 = pneg %p578
        $region178: #{tpu_custom_call.1} parent=171 // pred_check_branch
          %1718 = sbr.rel (%p1716) target = $region180
        $region179: #{tpu_custom_call.1} parent=171 // pred_region
          %s1719 = sand.u32 %s55, 1
          %s1720 = scalar_lea.sflag [#allocation27], %s1719
          %s1721 = sand.u32 %s563, 1
          %s1722 = smul.addr %s1721, 16
          %s1723 = scalar_lea.vmem [#allocation26], %s1722
          %1725 = dma.done %s1720, 256
        $region180: #{tpu_custom_call.1} parent=171 // pred_fallthru
          _
        // Predicated region
        $region181: #{tpu_custom_call.1} parent=171 // pred_check
          %p1726 = pneg %p606
        $region182: #{tpu_custom_call.1} parent=171 // pred_check_branch
          %1728 = sbr.rel (%p1726) target = $region184
        $region183: #{tpu_custom_call.1} parent=171 // pred_region
          %s1729 = sand.u32 %s55, 1
          %s1730 = scalar_lea.sflag [#allocation27], %s1729
          %s1731 = sand.u32 %s591, 1
          %s1732 = smul.addr %s1731, 2
          %s1733 = scalar_lea.vmem [#allocation28], %s1732
          %1735 = dma.done %s1730, 32
        $region184: #{tpu_custom_call.1} parent=171 // pred_fallthru
          _
      $region172: #{tpu_custom_call.1} parent=5 // pred_fallthru
        _
    $region6: #{tpu_custom_call.1} parent=1 // loop_footer
      %s53 = sadd.s32 1, %s49
    $region7: #{tpu_custom_call.1} parent=1 // loop_footer_branch
      %48 = sbr.rel target = $region3
    $region8: #{tpu_custom_call.1} parent=1 // loop_exit
      _
    %1736 = vsyncpa [#allocation6], 1
    %s1737 = scalar_lea.sflag [#allocation6], 1
    %1738 = vsyncpa %s1737, 1
    %1739 = vsyncpa [#allocation9], 1
    %s1740 = scalar_lea.sflag [#allocation9], 1
    %1741 = vsyncpa %s1740, 1
    %1742 = vsyncpa [#allocation12], 1
    %1743 = vsyncpa [#allocation15], 1
    %1744 = vsyncpa [#allocation18], 1
    %1745 = vsyncpa [#allocation21], 1
    %1746 = vsyncpa [#allocation24], 1
    %1747 = vsyncpa [#allocation7], 1
    %s1748 = scalar_lea.sflag [#allocation7], 1
    %1749 = vsyncpa %s1748, 1
    %1750 = vsyncpa [#allocation27], 1
    %s1751 = scalar_lea.sflag [#allocation27], 1
    %1752 = vsyncpa %s1751, 1

</llo_original>
